<compile_context>
chip_gen: v6e
topology: v6e:2x2x1
jax: 0.10.0
libtpu: 0.0.40
codegen_flags: <defaults>
</compile_context>

<pallas_src>
import functools

import jax
import jax.numpy as jnp
import numpy as np
from jax.experimental import pallas as pl
from jax.experimental.pallas import tpu as pltpu

_VMEM_LIMIT = 48 * 1024 * 1024  # fits v5e/v6e (128 MiB) and v7x (64 MiB) budgets


# ----------------------------------------------------------------------------
# Kernel 1: polyphase ConvTranspose2d(4, 2, 1) as a single 3x3 conv
# ----------------------------------------------------------------------------
def _deconv_poly_kernel(x_ref, w_ref, b_ref, o_ref, xp_ref, *, H, W, Cin, Cout4):
    # Zero-pad the input by 1 entirely in VMEM (no jnp.pad / extra HBM pass).
    xp_ref[...] = jnp.zeros_like(xp_ref)
    xp_ref[1:H + 1, 1:W + 1, :] = x_ref[0]
    # im2col once -> one MXU matmul with K = 9*Cin, lane-dense N = 4*Cout.
    cols = [xp_ref[kh:kh + H, kw:kw + W, :] for kh in range(3) for kw in range(3)]
    patches = jnp.concatenate(cols, axis=-1).reshape(H * W, 9 * Cin)
    acc = jnp.dot(patches, w_ref[...], preferred_element_type=jnp.float32)
    acc = acc + b_ref[...]
    o_ref[0] = acc.reshape(H, W, Cout4).astype(o_ref.dtype)


def deconv_polyphase(x1_nhwc, wg_hwio, bias4):
    N, H, W, Cin = x1_nhwc.shape
    Cout4 = wg_hwio.shape[-1]
    w_mat = wg_hwio.reshape(9 * Cin, Cout4).astype(jnp.bfloat16)
    kernel = functools.partial(_deconv_poly_kernel, H=H, W=W, Cin=Cin, Cout4=Cout4)
    # TODO(synk): add halo row tiling (grid=(N, row_tiles)) with manual DMA for
    # resolutions where a whole image per batch item no longer fits VMEM.
    return pl.pallas_call(
        kernel,
        out_shape=jax.ShapeDtypeStruct((N, H, W, Cout4), jnp.bfloat16),
        grid=(N,),
        in_specs=[
            pl.BlockSpec((1, H, W, Cin), lambda n: (n, 0, 0, 0)),
            pl.BlockSpec((9 * Cin, Cout4), lambda n: (0, 0)),
            pl.BlockSpec((1, Cout4), lambda n: (0, 0)),
        ],
        out_specs=pl.BlockSpec((1, H, W, Cout4), lambda n: (n, 0, 0, 0)),
        scratch_shapes=[pltpu.VMEM((H + 2, W + 2, Cin), jnp.bfloat16)],
        compiler_params=pltpu.CompilerParams(
            dimension_semantics=("parallel",),
            vmem_limit_bytes=_VMEM_LIMIT),
    )(x1_nhwc.astype(jnp.bfloat16), w_mat,
      bias4.reshape(1, Cout4).astype(jnp.float32))


# ----------------------------------------------------------------------------
# Kernel 2: fused ResBlock(3C -> C) with implicit concat + in-VMEM padding
# ----------------------------------------------------------------------------
def _resblock_fused_kernel(out1_ref, x2_ref, x3_ref, wa_ref, ba_ref, w1_ref,
                           b1_ref, o_ref, catp_ref, mp_ref, *, Hh, Wh, C):
    # torch.cat([outputs1, inputs2, inputs3], 1) + zero pad, entirely in VMEM.
    catp_ref[...] = jnp.zeros_like(catp_ref)
    catp_ref[1:Hh + 1, 1:Wh + 1, :] = jnp.concatenate(
        [out1_ref[0], x2_ref[0], x3_ref[0]], axis=-1)

    # conv_main[0] and conv_short share one im2col and one MXU matmul (2C lanes).
    cols = [catp_ref[kh:kh + Hh, kw:kw + Wh, :]
            for kh in range(3) for kw in range(3)]
    patches = jnp.concatenate(cols, axis=-1).reshape(Hh * Wh, 9 * 3 * C)
    both = jnp.dot(patches, wa_ref[...], preferred_element_type=jnp.float32)
    both = both + ba_ref[...]
    m = jnp.maximum(both[:, :C], 0.0)      # ReLU(BN(conv_main[0]))
    short = both[:, C:]                    # BN(conv_short), no activation

    # conv_main[1]: pad m in VMEM, im2col, matmul, bias, ReLU, + residual.
    mp_ref[...] = jnp.zeros_like(mp_ref)
    mp_ref[1:Hh + 1, 1:Wh + 1, :] = m.reshape(Hh, Wh, C).astype(mp_ref.dtype)
    cols2 = [mp_ref[kh:kh + Hh, kw:kw + Wh, :]
             for kh in range(3) for kw in range(3)]
    patches2 = jnp.concatenate(cols2, axis=-1).reshape(Hh * Wh, 9 * C)
    main = jnp.dot(patches2, w1_ref[...], preferred_element_type=jnp.float32)
    main = jnp.maximum(main + b1_ref[...], 0.0)
    out = main + short
    o_ref[0] = out.reshape(Hh, Wh, C).astype(o_ref.dtype)


def resblock_fused(out1, x2, x3, wa, ba, w1, b1):
    N, Hh, Wh, C = out1.shape
    kernel = functools.partial(_resblock_fused_kernel, Hh=Hh, Wh=Wh, C=C)
    return pl.pallas_call(
        kernel,
        out_shape=jax.ShapeDtypeStruct((N, Hh, Wh, C), jnp.float32),
        grid=(N,),
        in_specs=[
            pl.BlockSpec((1, Hh, Wh, C), lambda n: (n, 0, 0, 0)),
            pl.BlockSpec((1, Hh, Wh, C), lambda n: (n, 0, 0, 0)),
            pl.BlockSpec((1, Hh, Wh, C), lambda n: (n, 0, 0, 0)),
            pl.BlockSpec((9 * 3 * C, 2 * C), lambda n: (0, 0)),
            pl.BlockSpec((1, 2 * C), lambda n: (0, 0)),
            pl.BlockSpec((9 * C, C), lambda n: (0, 0)),
            pl.BlockSpec((1, C), lambda n: (0, 0)),
        ],
        out_specs=pl.BlockSpec((1, Hh, Wh, C), lambda n: (n, 0, 0, 0)),
        scratch_shapes=[
            pltpu.VMEM((Hh + 2, Wh + 2, 3 * C), jnp.bfloat16),  # padded concat
            pltpu.VMEM((Hh + 2, Wh + 2, C), jnp.bfloat16),      # padded m
        ],
        compiler_params=pltpu.CompilerParams(
            dimension_semantics=("parallel",),
            vmem_limit_bytes=_VMEM_LIMIT),
    )(out1.astype(jnp.bfloat16), x2.astype(jnp.bfloat16), x3.astype(jnp.bfloat16),
      wa.astype(jnp.bfloat16), ba.reshape(1, 2 * C).astype(jnp.float32),
      w1.astype(jnp.bfloat16), b1.reshape(1, C).astype(jnp.float32))


# ----------------------------------------------------------------------------
# JAX glue: polyphase weight packing, BN folding, depth-to-space, layout
# ----------------------------------------------------------------------------
def _polyphase_weight(w_deconv):
    """Pack ConvTranspose2d(4,2,1) weight (Cin,Cout,4,4) into a (3,3,Cin,4*Cout)
    block-sparse 3x3 conv weight; output channel block p = 2*ry + rx is the phase
    producing output pixels (2*qy+ry, 2*qx+rx)."""
    cin, cout = w_deconv.shape[0], w_deconv.shape[1]
    wg = jnp.zeros((3, 3, cin, 4 * cout), w_deconv.dtype)
    for ry in range(2):
        for rx in range(2):
            ph = 2 * ry + rx
            for ty in range(2):
                for tx in range(2):
                    dy, dx = ry + ty, rx + tx
                    ky, kx = 3 - ry - 2 * ty, 3 - rx - 2 * tx
                    wg = wg.at[dy, dx, :, ph * cout:(ph + 1) * cout].set(
                        w_deconv[:, :, ky, kx])
    return wg


def _depth_to_space_2x(x_phase):
    """(N,H,W,4C) phase-channel -> (N,2H,2W,C) interleaved (layout-only reshape)."""
    N, H, W, C4 = x_phase.shape
    C = C4 // 4
    x = x_phase.reshape(N, H, W, 2, 2, C)
    x = jnp.transpose(x, (0, 1, 3, 2, 4, 5))
    return x.reshape(N, 2 * H, 2 * W, C)


def _fold_bn(w_oihw, b, bn, eps=1e-5):
    """Fold eval-mode BatchNorm2d into preceding conv weights/bias (f32)."""
    gamma, beta, mean, var = bn
    scale = gamma / jnp.sqrt(var + eps)
    w_f = w_oihw * scale[:, None, None, None]
    b_f = (b - mean) * scale + beta
    return w_f, b_f


def _hwio_mat(w_oihw):
    """OIHW -> (9*Cin, Cout) matmul form matching the in-kernel im2col order."""
    o, i, kh, kw = w_oihw.shape
    return jnp.transpose(w_oihw, (2, 3, 1, 0)).reshape(kh * kw * i, o)


def unet_up3_res_forward(inputs1_nchw, inputs2_nchw, inputs3_nchw, p):
    """unetUp3_Res.forward (is_deconv=True, use_att=False): NCHW in / NCHW out."""
    C = p['up_w'].shape[1]  # out_size
    x1 = jnp.transpose(inputs1_nchw, (0, 2, 3, 1))
    x2 = jnp.transpose(inputs2_nchw, (0, 2, 3, 1))
    x3 = jnp.transpose(inputs3_nchw, (0, 2, 3, 1))

    # --- self.up : ConvTranspose2d(in,out,4,2,1) via polyphase decomposition ---
    wg = _polyphase_weight(p['up_w'])                 # (3,3,Cin,4C), f32
    b4 = jnp.tile(p['up_b'], 4)                       # (4C,)
    ph = deconv_polyphase(x1, wg, b4)                 # (N,H,W,4C), bf16
    out1 = _depth_to_space_2x(ph)                     # (N,2H,2W,C), bf16

    # --- conv_cat = ResBlock(3C, C), BN folded (eval mode), fully fused --------
    wm0, bm0 = _fold_bn(p['cm0_w'], p['cm0_b'], p['bn1'])
    wm1, bm1 = _fold_bn(p['cm1_w'], p['cm1_b'], p['bn2'])
    ws, bs = _fold_bn(p['cs_w'], p['cs_b'], p['bn3'])
    wa = jnp.concatenate([_hwio_mat(wm0), _hwio_mat(ws)], axis=-1)  # (27C, 2C)
    ba = jnp.concatenate([bm0, bs])                                 # (2C,)
    w1 = _hwio_mat(wm1)                                             # (9C, C)

    out = resblock_fused(out1, x2, x3, wa, ba, w1, bm1)             # (N,2H,2W,C)
    return jnp.transpose(out, (0, 3, 1, 2))


# ----------------------------------------------------------------------------
# Deterministic parameter init (PyTorch module shapes)
# ----------------------------------------------------------------------------
def init_params(key, in_size, out_size):
    ks = jax.random.split(key, 12)
    c3 = 3 * out_size

    def bn_params(k, c):
        gamma = 1.0 + 0.1 * jax.random.normal(jax.random.fold_in(k, 0), (c,), jnp.float32)
        beta = 0.1 * jax.random.normal(jax.random.fold_in(k, 1), (c,), jnp.float32)
        mean = 0.05 * jax.random.normal(jax.random.fold_in(k, 2), (c,), jnp.float32)
        var = 0.5 + jax.random.uniform(jax.random.fold_in(k, 3), (c,), jnp.float32)
        return (gamma, beta, mean, var)

    return {
        # self.up : ConvTranspose2d(in_size, out_size, 4, 2, 1)
        'up_w': 0.1 * jax.random.normal(ks[0], (in_size, out_size, 4, 4), jnp.float32),
        'up_b': 0.05 * jax.random.normal(ks[1], (out_size,), jnp.float32),
        # ResBlock.conv_main[0] : Conv2d(3*out, out, 3, 1, 1) + BN
        'cm0_w': 0.1 * jax.random.normal(ks[2], (out_size, c3, 3, 3), jnp.float32),
        'cm0_b': 0.05 * jax.random.normal(ks[3], (out_size,), jnp.float32),
        'bn1': bn_params(ks[4], out_size),
        # ResBlock.conv_main[3] : Conv2d(out, out, 3, 1, 1) + BN
        'cm1_w': 0.1 * jax.random.normal(ks[5], (out_size, out_size, 3, 3), jnp.float32),
        'cm1_b': 0.05 * jax.random.normal(ks[6], (out_size,), jnp.float32),
        'bn2': bn_params(ks[7], out_size),
        # ResBlock.conv_short[0] : Conv2d(3*out, out, 3, 1, 1) + BN
        'cs_w': 0.1 * jax.random.normal(ks[8], (out_size, c3, 3, 3), jnp.float32),
        'cs_b': 0.05 * jax.random.normal(ks[9], (out_size,), jnp.float32),
        'bn3': bn_params(ks[10], out_size),
    }


# ----------------------------------------------------------------------------
# Pure-JAX (XLA conv) reference with matching bf16 quantization points
# ----------------------------------------------------------------------------
def ref_forward(x1_nchw, x2_nchw, x3_nchw, p):
    dn = ('NHWC', 'HWIO', 'NHWC')
    x1 = jnp.transpose(x1_nchw, (0, 2, 3, 1)).astype(jnp.bfloat16)
    x2 = jnp.transpose(x2_nchw, (0, 2, 3, 1)).astype(jnp.bfloat16)
    x3 = jnp.transpose(x3_nchw, (0, 2, 3, 1)).astype(jnp.bfloat16)

    # ConvTranspose2d as zero-dilated conv with spatially flipped kernel.
    w_up = jnp.transpose(jnp.flip(p['up_w'], axis=(2, 3)), (2, 3, 0, 1)).astype(jnp.bfloat16)
    up = jax.lax.conv_general_dilated(
        x1, w_up, (1, 1), ((2, 2), (2, 2)), lhs_dilation=(2, 2),
        dimension_numbers=dn, preferred_element_type=jnp.float32) + p['up_b']
    up = up.astype(jnp.bfloat16)

    cat = jnp.concatenate([up, x2, x3], axis=-1)

    def c3(x_bf, w_oihw, b):
        w = jnp.transpose(w_oihw, (2, 3, 1, 0)).astype(jnp.bfloat16)
        return jax.lax.conv_general_dilated(
            x_bf, w, (1, 1), ((1, 1), (1, 1)),
            dimension_numbers=dn, preferred_element_type=jnp.float32) + b

    wm0, bm0 = _fold_bn(p['cm0_w'], p['cm0_b'], p['bn1'])
    wm1, bm1 = _fold_bn(p['cm1_w'], p['cm1_b'], p['bn2'])
    ws, bs = _fold_bn(p['cs_w'], p['cs_b'], p['bn3'])

    m = jax.nn.relu(c3(cat, wm0, bm0)).astype(jnp.bfloat16)
    main = jax.nn.relu(c3(m, wm1, bm1))
    short = c3(cat, ws, bs)
    return jnp.transpose(main + short, (0, 3, 1, 2))


# ----------------------------------------------------------------------------
if __name__ == "__main__":
    key = jax.random.PRNGKey(0)
    in_size, out_size = 16, 8
    N, H, W = 2, 16, 16

    kp, k1, k2, k3 = jax.random.split(key, 4)
    params = init_params(kp, in_size, out_size)

    inputs1 = jax.random.normal(k1, (N, in_size, H, W), jnp.float32)
    inputs2 = jax.random.normal(k2, (N, out_size, 2 * H, 2 * W), jnp.float32)
    inputs3 = jax.random.normal(k3, (N, out_size, 2 * H, 2 * W), jnp.float32)

    out = unet_up3_res_forward(inputs1, inputs2, inputs3, params)
    out = jax.block_until_ready(out)
    assert out.shape == (N, out_size, 2 * H, 2 * W)

    ref = ref_forward(inputs1, inputs2, inputs3, params)
    np.testing.assert_allclose(np.asarray(out, dtype=np.float32),
                               np.asarray(ref, dtype=np.float32),
                               rtol=1e-2, atol=1e-2)
    print("KERNEL_OK")
</pallas_src>

<mosaic_0001>
module attributes {stable_mosaic.version = 11 : i64} {
  func.func @_deconv_poly_kernel(%arg0: i32, %arg1: memref<1x16x16x16xbf16, #tpu.memory_space<vmem>>, %arg2: memref<144x32xbf16, #tpu.memory_space<vmem>>, %arg3: memref<1x32xf32, #tpu.memory_space<vmem>>, %arg4: memref<1x16x16x32xbf16, #tpu.memory_space<vmem>>, %arg5: memref<18x18x16xbf16, #tpu.memory_space<vmem>>) attributes {dimension_semantics = [#tpu.dimension_semantics<parallel>], iteration_bounds = array<i64: 2>, scalar_prefetch = 0 : i64, scratch_operands = 1 : i64, tpu.core_type = #tpu.core_type<tc>, window_params = [{transform_indices = @transform_0, window_bounds = array<i64: 1, 16, 16, 16>}, {pipeline_mode = #tpu.pipeline_mode<synchronous>, transform_indices = @transform_1, window_bounds = array<i64: 144, 32>}, {pipeline_mode = #tpu.pipeline_mode<synchronous>, transform_indices = @transform_2, window_bounds = array<i64: 1, 32>}, {transform_indices = @transform_3, window_bounds = array<i64: 1, 16, 16, 32>}]} {
    %cst = arith.constant 0.000000e+00 : bf16
    %0 = vector.broadcast %cst : bf16 to vector<18x18x16xbf16>
    %c0 = arith.constant 0 : index
    %c0_0 = arith.constant 0 : index
    %c0_1 = arith.constant 0 : index
    %1 = vector.load %arg5[%c0, %c0_0, %c0_1] : memref<18x18x16xbf16, #tpu.memory_space<vmem>>, vector<18x18x16xbf16>
    tpu.vector_store %arg5[%c0, %c0_0, %c0_1], %0 {strides = array<i32>} : memref<18x18x16xbf16, #tpu.memory_space<vmem>>, vector<18x18x16xbf16>,
    %c0_2 = arith.constant 0 : index
    %c0_3 = arith.constant 0 : index
    %c0_4 = arith.constant 0 : index
    %c0_5 = arith.constant 0 : index
    %2 = vector.load %arg1[%c0_2, %c0_3, %c0_4, %c0_5] : memref<1x16x16x16xbf16, #tpu.memory_space<vmem>>, vector<1x16x16x16xbf16>
    %3 = vector.shape_cast %2 : vector<1x16x16x16xbf16> to vector<16x16x16xbf16>
    %c1 = arith.constant 1 : index
    %c1_6 = arith.constant 1 : index
    %c0_7 = arith.constant 0 : index
    %4 = vector.load %arg5[%c1, %c1_6, %c0_7] : memref<18x18x16xbf16, #tpu.memory_space<vmem>>, vector<16x16x16xbf16>
    tpu.vector_store %arg5[%c1, %c1_6, %c0_7], %3 {strides = array<i32>} : memref<18x18x16xbf16, #tpu.memory_space<vmem>>, vector<16x16x16xbf16>,
    %c0_8 = arith.constant 0 : index
    %c0_9 = arith.constant 0 : index
    %c0_10 = arith.constant 0 : index
    %5 = vector.load %arg5[%c0_8, %c0_9, %c0_10] : memref<18x18x16xbf16, #tpu.memory_space<vmem>>, vector<16x16x16xbf16>
    %c0_11 = arith.constant 0 : index
    %c1_12 = arith.constant 1 : index
    %c0_13 = arith.constant 0 : index
    %6 = vector.load %arg5[%c0_11, %c1_12, %c0_13] : memref<18x18x16xbf16, #tpu.memory_space<vmem>>, vector<16x16x16xbf16>
    %c0_14 = arith.constant 0 : index
    %c2 = arith.constant 2 : index
    %c0_15 = arith.constant 0 : index
    %7 = vector.load %arg5[%c0_14, %c2, %c0_15] : memref<18x18x16xbf16, #tpu.memory_space<vmem>>, vector<16x16x16xbf16>
    %c1_16 = arith.constant 1 : index
    %c0_17 = arith.constant 0 : index
    %c0_18 = arith.constant 0 : index
    %8 = vector.load %arg5[%c1_16, %c0_17, %c0_18] : memref<18x18x16xbf16, #tpu.memory_space<vmem>>, vector<16x16x16xbf16>
    %c1_19 = arith.constant 1 : index
    %c1_20 = arith.constant 1 : index
    %c0_21 = arith.constant 0 : index
    %9 = vector.load %arg5[%c1_19, %c1_20, %c0_21] : memref<18x18x16xbf16, #tpu.memory_space<vmem>>, vector<16x16x16xbf16>
    %c1_22 = arith.constant 1 : index
    %c2_23 = arith.constant 2 : index
    %c0_24 = arith.constant 0 : index
    %10 = vector.load %arg5[%c1_22, %c2_23, %c0_24] : memref<18x18x16xbf16, #tpu.memory_space<vmem>>, vector<16x16x16xbf16>
    %c2_25 = arith.constant 2 : index
    %c0_26 = arith.constant 0 : index
    %c0_27 = arith.constant 0 : index
    %11 = vector.load %arg5[%c2_25, %c0_26, %c0_27] : memref<18x18x16xbf16, #tpu.memory_space<vmem>>, vector<16x16x16xbf16>
    %c2_28 = arith.constant 2 : index
    %c1_29 = arith.constant 1 : index
    %c0_30 = arith.constant 0 : index
    %12 = vector.load %arg5[%c2_28, %c1_29, %c0_30] : memref<18x18x16xbf16, #tpu.memory_space<vmem>>, vector<16x16x16xbf16>
    %c2_31 = arith.constant 2 : index
    %c2_32 = arith.constant 2 : index
    %c0_33 = arith.constant 0 : index
    %13 = vector.load %arg5[%c2_31, %c2_32, %c0_33] : memref<18x18x16xbf16, #tpu.memory_space<vmem>>, vector<16x16x16xbf16>
    %14 = tpu.concatenate %5, %6, %7, %8, %9, %10, %11, %12, %13 in 2 : vector<16x16x16xbf16>, vector<16x16x16xbf16>, vector<16x16x16xbf16>, vector<16x16x16xbf16>, vector<16x16x16xbf16>, vector<16x16x16xbf16>, vector<16x16x16xbf16>, vector<16x16x16xbf16>, vector<16x16x16xbf16> -> vector<16x16x144xbf16>
    %15 = vector.shape_cast %14 : vector<16x16x144xbf16> to vector<256x144xbf16>
    %c0_34 = arith.constant 0 : index
    %c0_35 = arith.constant 0 : index
    %16 = vector.load %arg2[%c0_34, %c0_35] : memref<144x32xbf16, #tpu.memory_space<vmem>>, vector<144x32xbf16>
    %cst_36 = arith.constant dense<0.000000e+00> : vector<256x32xf32>
    %17 = tpu.matmul %15, %16, %cst_36 {dimension_numbers = #tpu.dot_dimension_numbers<[1], [0], [0], [1], [0, 0, 1, 1], [], []>} : vector<256x144xbf16>, vector<144x32xbf16>, vector<256x32xf32> -> vector<256x32xf32>
    %c0_37 = arith.constant 0 : index
    %c0_38 = arith.constant 0 : index
    %18 = vector.load %arg3[%c0_37, %c0_38] : memref<1x32xf32, #tpu.memory_space<vmem>>, vector<1x32xf32>
    %19 = vector.broadcast %18 : vector<1x32xf32> to vector<256x32xf32>
    %20 = arith.addf %17, %19 : vector<256x32xf32>
    %21 = vector.shape_cast %20 : vector<256x32xf32> to vector<16x16x32xf32>
    %22 = arith.truncf %21 : vector<16x16x32xf32> to vector<16x16x32xbf16>
    %c0_39 = arith.constant 0 : index
    %c0_40 = arith.constant 0 : index
    %c0_41 = arith.constant 0 : index
    %c0_42 = arith.constant 0 : index
    %23 = vector.load %arg4[%c0_39, %c0_40, %c0_41, %c0_42] : memref<1x16x16x32xbf16, #tpu.memory_space<vmem>>, vector<1x16x16x32xbf16>
    %24 = vector.shape_cast %23 : vector<1x16x16x32xbf16> to vector<16x16x32xbf16>
    %25 = vector.shape_cast %22 : vector<16x16x32xbf16> to vector<1x16x16x32xbf16>
    tpu.vector_store %arg4[%c0_39, %c0_40, %c0_41, %c0_42], %25 {strides = array<i32>} : memref<1x16x16x32xbf16, #tpu.memory_space<vmem>>, vector<1x16x16x32xbf16>,
    return
  }
  func.func @transform_0(%arg0: i32) -> (i32, i32, i32, i32) {
    %c0_i32 = arith.constant 0 : i32
    %c0_i32_0 = arith.constant 0 : i32
    %c0_i32_1 = arith.constant 0 : i32
    %c0_i32_2 = arith.constant 0 : i32
    return %arg0, %c0_i32, %c0_i32_0, %c0_i32_1 : i32, i32, i32, i32
  }
  func.func @transform_1(%arg0: i32) -> (i32, i32) {
    %c0_i32 = arith.constant 0 : i32
    %c0_i32_0 = arith.constant 0 : i32
    %c0_i32_1 = arith.constant 0 : i32
    return %c0_i32, %c0_i32_0 : i32, i32
  }
  func.func @transform_2(%arg0: i32) -> (i32, i32) {
    %c0_i32 = arith.constant 0 : i32
    %c0_i32_0 = arith.constant 0 : i32
    %c0_i32_1 = arith.constant 0 : i32
    return %c0_i32, %c0_i32_0 : i32, i32
  }
  func.func @transform_3(%arg0: i32) -> (i32, i32, i32, i32) {
    %c0_i32 = arith.constant 0 : i32
    %c0_i32_0 = arith.constant 0 : i32
    %c0_i32_1 = arith.constant 0 : i32
    %c0_i32_2 = arith.constant 0 : i32
    return %arg0, %c0_i32, %c0_i32_0, %c0_i32_1 : i32, i32, i32, i32
  }
}

</mosaic_0001>

<llo_original>
// kernel: tpu_custom_call.1
$region0: #{tpu_custom_call.1}
  #allocation0 [shape = 'u32[]', space=smem, size = 0x4, offset = 0x4, fixed_abs, tag = 'smem constant byte address 0x4 - core index']
  #allocation1 [shape = 'u32[144,128]{1,0:T(1,128)}', space=vmem, size = 0x12000, scoped, tag = 'internal scratch']
  #allocation2 [shape = 'bf16[18,18,16]{2,1,0:T(8,128)(2,1)}', space=vmem, size = 0x1b000, scoped, tag = 'scratch operand']
  %s0 = inlined_call_operand.hbm [shape: bf16[2,16,16,16], index: 0, kind: input, shape index: {}]
  %s1 = inlined_call_operand.vmem [shape: bf16[144,32], index: 1, kind: input, shape index: {}]
  %s2 = inlined_call_operand.vmem [shape: f32[1,32], index: 2, kind: input, shape index: {}]
  %s3 = inlined_call_operand.hbm [shape: bf16[2,16,16,32], index: 3, kind: output, shape index: {}]
  %s4 = sld [smem:[#allocation0]]
  $region49: #{tpu_custom_call.1} parent=0
    _
  %s6 = ssub.s32 1, %s4
  %s7 = scalar_select 0, %s6, %s4
  $region1: #{tpu_custom_call.1} parent=0
    #allocation3 [shape = 'u8[131072]{0}', space=vmem, size = 0x20000, scoped, tag = 'input window, operand 0']
    #allocation4 [shape = 's32[2]{0}', space=sflag, size = 0x8, scoped, tag = 'scoped memory for tpu_custom_call.1']
    #allocation5 [shape = 's32[2]{0}', space=sflag, size = 0x8, scoped, tag = 'scoped memory for tpu_custom_call.1']
    #allocation6 [shape = 'u8[131072]{0}', space=vmem, size = 0x20000, scoped, tag = 'output window, operand 0']
    %8 = vsyncpa [#allocation4], 0
    %s9 = scalar_lea.sflag [#allocation4], 1
    %10 = vsyncpa %s9, 0
    %11 = vsyncpa [#allocation5], 0
    %s12 = scalar_lea.sflag [#allocation5], 1
    %13 = vsyncpa %s12, 0
    loop: start=0, step=1, limit=4
    $region2: #{tpu_custom_call.1} parent=1 // loop_pre_header
      _
    $region3: #{tpu_custom_call.1} parent=1 // loop_header
      %s15 = sphi 0, %s19
      %p16 = scmp.ge.s32.totalorder %s15, 4
      %s25 = sphi 0, %s27
      %s28 = sphi 0, %s25
      %s29 = sphi 0, %s28
      %s45 = sphi 0, %s29
      %s49 = sphi 0, %s49
      %s51 = sphi 0, %s49
      %s52 = sphi 0, %s51
      %s66 = sphi 0, %s52
      %s70 = sphi 0, %s70
      %s72 = sphi 0, %s70
      %s73 = sphi 0, %s72
      %s87 = sphi 0, %s73
      %s93 = sphi 0, %s95
      %s96 = sphi 0, %s93
      %s97 = sphi 0, %s96
      %s113 = sphi 0, %s97
    $region4: #{tpu_custom_call.1} parent=1 // loop_header_branch
      %18 = sbr.rel (%p16) target = $region8
    $region5: #{tpu_custom_call.1} parent=1 // loop_body
      %s20 = ssub.s32 %s15, 1
      %s21 = ssub.s32 %s15, 2
      %s22 = sadd.s32 %s15, 1
      %s23 = ssub.s32 %s15, %s22
      %p24 = scmp.eq.s32.totalorder %s23, 0
      %s26 = sadd.s32 %s25, 1
      %s27 = scalar_select %p24, %s25, %s26
      %p30 = pneg %p24
      %p31 = scmp.eq.s32.totalorder %s15, 1
      %p32 = por %p30, %p31
      %p33 = scmp.ne.s32.totalorder %s25, %s28
      %p34 = scmp.eq.s32.totalorder %s15, 0
      %p35 = por %p33, %p34
      %p36 = scmp.ne.s32.totalorder %s25, %s28
      %p37 = scmp.eq.s32.totalorder %s20, 1
      %p38 = por %p36, %p37
      %p39 = scmp.ne.s32.totalorder %s28, %s29
      %p40 = scmp.eq.s32.totalorder %s20, 0
      %p41 = por %p39, %p40
      %p42 = scmp.ne.s32.totalorder %s28, %s29
      %p43 = scmp.eq.s32.totalorder %s21, 1
      %p44 = por %p42, %p43
      %p46 = scmp.ne.s32.totalorder %s29, %s45
      %p47 = scmp.eq.s32.totalorder %s21, 0
      %p48 = por %p46, %p47
      %s50 = sadd.s32 %s49, 1
      %p53 = scmp.eq.s32.totalorder %s15, 1
      %p54 = scmp.ne.s32.totalorder %s49, %s51
      %p55 = scmp.eq.s32.totalorder %s15, 0
      %p56 = por %p54, %p55
      %p57 = scmp.ne.s32.totalorder %s49, %s51
      %p58 = scmp.eq.s32.totalorder %s20, 1
      %p59 = por %p57, %p58
      %p60 = scmp.ne.s32.totalorder %s51, %s52
      %p61 = scmp.eq.s32.totalorder %s20, 0
      %p62 = por %p60, %p61
      %p63 = scmp.ne.s32.totalorder %s51, %s52
      %p64 = scmp.eq.s32.totalorder %s21, 1
      %p65 = por %p63, %p64
      %p67 = scmp.ne.s32.totalorder %s52, %s66
      %p68 = scmp.eq.s32.totalorder %s21, 0
      %p69 = por %p67, %p68
      %s71 = sadd.s32 %s70, 1
      %p74 = scmp.eq.s32.totalorder %s15, 1
      %p75 = scmp.ne.s32.totalorder %s70, %s72
      %p76 = scmp.eq.s32.totalorder %s15, 0
      %p77 = por %p75, %p76
      %p78 = scmp.ne.s32.totalorder %s70, %s72
      %p79 = scmp.eq.s32.totalorder %s20, 1
      %p80 = por %p78, %p79
      %p81 = scmp.ne.s32.totalorder %s72, %s73
      %p82 = scmp.eq.s32.totalorder %s20, 0
      %p83 = por %p81, %p82
      %p84 = scmp.ne.s32.totalorder %s72, %s73
      %p85 = scmp.eq.s32.totalorder %s21, 1
      %p86 = por %p84, %p85
      %p88 = scmp.ne.s32.totalorder %s73, %s87
      %p89 = scmp.eq.s32.totalorder %s21, 0
      %p90 = por %p88, %p89
      %s91 = ssub.s32 %s15, %s22
      %p92 = scmp.eq.s32.totalorder %s91, 0
      %s94 = sadd.s32 %s93, 1
      %s95 = scalar_select %p92, %s93, %s94
      %p98 = pneg %p92
      %p99 = scmp.eq.s32.totalorder %s15, 1
      %p100 = por %p98, %p99
      %p101 = scmp.ne.s32.totalorder %s93, %s96
      %p102 = scmp.eq.s32.totalorder %s15, 0
      %p103 = por %p101, %p102
      %p104 = scmp.ne.s32.totalorder %s93, %s96
      %p105 = scmp.eq.s32.totalorder %s20, 1
      %p106 = por %p104, %p105
      %p107 = scmp.ne.s32.totalorder %s96, %s97
      %p108 = scmp.eq.s32.totalorder %s20, 0
      %p109 = por %p107, %p108
      %p110 = scmp.ne.s32.totalorder %s96, %s97
      %p111 = scmp.eq.s32.totalorder %s21, 1
      %p112 = por %p110, %p111
      %p114 = scmp.ne.s32.totalorder %s97, %s113
      %p115 = scmp.eq.s32.totalorder %s21, 0
      %p116 = por %p114, %p115
      %p117 = scmp.le.s32.totalorder 1, %s15
      %p118 = scmp.lt.s32.totalorder %s15, 3
      %p119 = pnand %p117, %p118
      %p120 = pneg %p119
      // Predicated region
      $region9: #{tpu_custom_call.1} parent=5 // pred_check
        _
      $region10: #{tpu_custom_call.1} parent=5 // pred_check_branch
        %122 = sbr.rel (%p119) target = $region12
      $region11: #{tpu_custom_call.1} parent=5 // pred_region
        %s123 = ssub.s32 %s15, 1
        // Predicated region
        $region13: #{tpu_custom_call.1} parent=11 // pred_check
          %p124 = pneg %p62
        $region14: #{tpu_custom_call.1} parent=11 // pred_check_branch
          %126 = sbr.rel (%p124) target = $region16
        $region15: #{tpu_custom_call.1} parent=11 // pred_region
          _
        $region16: #{tpu_custom_call.1} parent=11 // pred_fallthru
          _
        // Predicated region
        $region17: #{tpu_custom_call.1} parent=11 // pred_check
          %p127 = pneg %p83
        $region18: #{tpu_custom_call.1} parent=11 // pred_check_branch
          %129 = sbr.rel (%p127) target = $region20
        $region19: #{tpu_custom_call.1} parent=11 // pred_region
          _
        $region20: #{tpu_custom_call.1} parent=11 // pred_fallthru
          _
      $region12: #{tpu_custom_call.1} parent=5 // pred_fallthru
        _
      %p130 = scmp.lt.s32.totalorder %s15, 2
      // Predicated region
      $region21: #{tpu_custom_call.1} parent=5 // pred_check
        %p131 = pneg %p130
      $region22: #{tpu_custom_call.1} parent=5 // pred_check_branch
        %133 = sbr.rel (%p131) target = $region24
      $region23: #{tpu_custom_call.1} parent=5 // pred_region
        // Predicated region
        $region25: #{tpu_custom_call.1} parent=23 // pred_check
          %p134 = pneg %p35
        $region26: #{tpu_custom_call.1} parent=23 // pred_check_branch
          %136 = sbr.rel (%p134) target = $region28
        $region27: #{tpu_custom_call.1} parent=23 // pred_region
          %s137 = sand.u32 %s25, 1
          %s138 = scalar_lea.sflag [#allocation4], %s137
          %s139 = sand.u32 %s25, 1
          %s140 = smul.addr %s139, 128
          %s141 = scalar_lea.vmem [#allocation3], %s140
          %s143 = ssub.s32 2048, 2048
          %144 = vsyncadd %s138, %s143
          %s145 = smul.addr %s15, 32
          %s146 = smul.addr %s145, 64
          %s147 = scalar_lea.hbm %s0, %s146
          %s148 = sshll.u32 %s141, 4
          %s149 = int_to_ptr.vmem [resolvable:$true] %s148
          %154 = dma.hbm_to_vmem [thread:$0]  %s147, 2048, %s149, %s138, 64, 64, 4
        $region28: #{tpu_custom_call.1} parent=23 // pred_fallthru
          _
      $region24: #{tpu_custom_call.1} parent=5 // pred_fallthru
        _
      %p155 = scmp.le.s32.totalorder 1, %s15
      %p156 = scmp.lt.s32.totalorder %s15, 3
      %p157 = pnand %p155, %p156
      %p158 = pneg %p157
      // Predicated region
      $region29: #{tpu_custom_call.1} parent=5 // pred_check
        _
      $region30: #{tpu_custom_call.1} parent=5 // pred_check_branch
        %160 = sbr.rel (%p157) target = $region32
      $region31: #{tpu_custom_call.1} parent=5 // pred_region
        %s161 = ssub.s32 %s15, 1
        %s162 = sand.u32 %s28, 1
        %s163 = scalar_lea.sflag [#allocation4], %s162
        %s164 = sand.u32 %s28, 1
        %s165 = smul.addr %s164, 128
        %s166 = scalar_lea.vmem [#allocation3], %s165
        // Predicated region
        $region33: #{tpu_custom_call.1} parent=31 // pred_check
          %p167 = pneg %p41
        $region34: #{tpu_custom_call.1} parent=31 // pred_check_branch
          %169 = sbr.rel (%p167) target = $region36
        $region35: #{tpu_custom_call.1} parent=31 // pred_region
          %170 = dma.done %s163, 2048
        $region36: #{tpu_custom_call.1} parent=31 // pred_fallthru
          _
        %s171 = sand.u32 %s28, 1
        %s172 = scalar_lea.sflag [#allocation4], %s171
        %s173 = sand.u32 %s28, 1
        %s174 = smul.addr %s173, 128
        %s175 = scalar_lea.vmem [#allocation3], %s174
        %p176 = pneg %p41
        %p177 = pneg %p38
        %p178 = pneg %p62
        %p179 = pneg %p59
        %p180 = pneg %p83
        %p181 = pneg %p80
        %p182 = pneg %p109
        %p183 = pneg %p106
        %s184 = sand.u32 %s96, 1
        %s185 = scalar_lea.sflag [#allocation5], %s184
        %s186 = sand.u32 %s96, 1
        %s187 = smul.addr %s186, 128
        %s188 = scalar_lea.vmem [#allocation6], %s187
        %vm190 = vcmask 125952
        %191 = vst.msk [vmem:[#allocation2] sm:$0xf] %vm190, 0
        %192 = vst.msk [vmem:[#allocation2 + $0x4] sm:$0xf] %vm190, 0
        %vm193 = vcmask 122880
        %194 = vst.msk [vmem:[#allocation2 + $0x8] sm:$0x1] %vm193, 0
        %195 = vst.msk [vmem:[#allocation2 + $0xc] sm:$0xf] %vm190, 0
        %196 = vst.msk [vmem:[#allocation2 + $0x10] sm:$0xf] %vm190, 0
        %197 = vst.msk [vmem:[#allocation2 + $0x14] sm:$0x1] %vm193, 0
        %198 = vst.msk [vmem:[#allocation2 + $0x18] sm:$0xf] %vm190, 0
        %199 = vst.msk [vmem:[#allocation2 + $0x1c] sm:$0xf] %vm190, 0
        %200 = vst.msk [vmem:[#allocation2 + $0x20] sm:$0x1] %vm193, 0
        %201 = vst.msk [vmem:[#allocation2 + $0x24] sm:$0xf] %vm190, 0
        %202 = vst.msk [vmem:[#allocation2 + $0x28] sm:$0xf] %vm190, 0
        %203 = vst.msk [vmem:[#allocation2 + $0x2c] sm:$0x1] %vm193, 0
        %204 = vst.msk [vmem:[#allocation2 + $0x30] sm:$0xf] %vm190, 0
        %205 = vst.msk [vmem:[#allocation2 + $0x34] sm:$0xf] %vm190, 0
        %206 = vst.msk [vmem:[#allocation2 + $0x38] sm:$0x1] %vm193, 0
        %207 = vst.msk [vmem:[#allocation2 + $0x3c] sm:$0xf] %vm190, 0
        %208 = vst.msk [vmem:[#allocation2 + $0x40] sm:$0xf] %vm190, 0
        %209 = vst.msk [vmem:[#allocation2 + $0x44] sm:$0x1] %vm193, 0
        %210 = vst.msk [vmem:[#allocation2 + $0x48] sm:$0xf] %vm190, 0
        %211 = vst.msk [vmem:[#allocation2 + $0x4c] sm:$0xf] %vm190, 0
        %212 = vst.msk [vmem:[#allocation2 + $0x50] sm:$0x1] %vm193, 0
        %213 = vst.msk [vmem:[#allocation2 + $0x54] sm:$0xf] %vm190, 0
        %214 = vst.msk [vmem:[#allocation2 + $0x58] sm:$0xf] %vm190, 0
        %215 = vst.msk [vmem:[#allocation2 + $0x5c] sm:$0x1] %vm193, 0
        %216 = vst.msk [vmem:[#allocation2 + $0x60] sm:$0xf] %vm190, 0
        %217 = vst.msk [vmem:[#allocation2 + $0x64] sm:$0xf] %vm190, 0
        %218 = vst.msk [vmem:[#allocation2 + $0x68] sm:$0x1] %vm193, 0
        %219 = vst.msk [vmem:[#allocation2 + $0x6c] sm:$0xf] %vm190, 0
        %220 = vst.msk [vmem:[#allocation2 + $0x70] sm:$0xf] %vm190, 0
        %221 = vst.msk [vmem:[#allocation2 + $0x74] sm:$0x1] %vm193, 0
        %222 = vst.msk [vmem:[#allocation2 + $0x78] sm:$0xf] %vm190, 0
        %223 = vst.msk [vmem:[#allocation2 + $0x7c] sm:$0xf] %vm190, 0
        %224 = vst.msk [vmem:[#allocation2 + $0x80] sm:$0x1] %vm193, 0
        %225 = vst.msk [vmem:[#allocation2 + $0x84] sm:$0xf] %vm190, 0
        %226 = vst.msk [vmem:[#allocation2 + $0x88] sm:$0xf] %vm190, 0
        %227 = vst.msk [vmem:[#allocation2 + $0x8c] sm:$0x1] %vm193, 0
        %228 = vst.msk [vmem:[#allocation2 + $0x90] sm:$0xf] %vm190, 0
        %229 = vst.msk [vmem:[#allocation2 + $0x94] sm:$0xf] %vm190, 0
        %230 = vst.msk [vmem:[#allocation2 + $0x98] sm:$0x1] %vm193, 0
        %231 = vst.msk [vmem:[#allocation2 + $0x9c] sm:$0xf] %vm190, 0
        %232 = vst.msk [vmem:[#allocation2 + $0xa0] sm:$0xf] %vm190, 0
        %233 = vst.msk [vmem:[#allocation2 + $0xa4] sm:$0x1] %vm193, 0
        %234 = vst.msk [vmem:[#allocation2 + $0xa8] sm:$0xf] %vm190, 0
        %235 = vst.msk [vmem:[#allocation2 + $0xac] sm:$0xf] %vm190, 0
        %236 = vst.msk [vmem:[#allocation2 + $0xb0] sm:$0x1] %vm193, 0
        %237 = vst.msk [vmem:[#allocation2 + $0xb4] sm:$0xf] %vm190, 0
        %238 = vst.msk [vmem:[#allocation2 + $0xb8] sm:$0xf] %vm190, 0
        %239 = vst.msk [vmem:[#allocation2 + $0xbc] sm:$0x1] %vm193, 0
        %240 = vst.msk [vmem:[#allocation2 + $0xc0] sm:$0xf] %vm190, 0
        %241 = vst.msk [vmem:[#allocation2 + $0xc4] sm:$0xf] %vm190, 0
        %242 = vst.msk [vmem:[#allocation2 + $0xc8] sm:$0x1] %vm193, 0
        %243 = vst.msk [vmem:[#allocation2 + $0xcc] sm:$0xf] %vm190, 0
        %244 = vst.msk [vmem:[#allocation2 + $0xd0] sm:$0xf] %vm190, 0
        %245 = vst.msk [vmem:[#allocation2 + $0xd4] sm:$0x1] %vm193, 0
        %v246 = vld [vmem:[%s166] sm:$0xf]
        %v247 = vld [vmem:[%s166 + $0x4] sm:$0xf]
        %v248 = vld [vmem:[%s166 + $0x8] sm:$0xf]
        %v249 = vld [vmem:[%s166 + $0xc] sm:$0xf]
        %v250 = vld [vmem:[%s166 + $0x10] sm:$0xf]
        %v251 = vld [vmem:[%s166 + $0x14] sm:$0xf]
        %v252 = vld [vmem:[%s166 + $0x18] sm:$0xf]
        %v253 = vld [vmem:[%s166 + $0x1c] sm:$0xf]
        %v254 = vld [vmem:[%s166 + $0x20] sm:$0xf]
        %v255 = vld [vmem:[%s166 + $0x24] sm:$0xf]
        %v256 = vld [vmem:[%s166 + $0x28] sm:$0xf]
        %v257 = vld [vmem:[%s166 + $0x2c] sm:$0xf]
        %v258 = vld [vmem:[%s166 + $0x30] sm:$0xf]
        %v259 = vld [vmem:[%s166 + $0x34] sm:$0xf]
        %v260 = vld [vmem:[%s166 + $0x38] sm:$0xf]
        %v261 = vld [vmem:[%s166 + $0x3c] sm:$0xf]
        %v262 = vld [vmem:[%s166 + $0x40] sm:$0xf]
        %v263 = vld [vmem:[%s166 + $0x44] sm:$0xf]
        %v264 = vld [vmem:[%s166 + $0x48] sm:$0xf]
        %v265 = vld [vmem:[%s166 + $0x4c] sm:$0xf]
        %v266 = vld [vmem:[%s166 + $0x50] sm:$0xf]
        %v267 = vld [vmem:[%s166 + $0x54] sm:$0xf]
        %v268 = vld [vmem:[%s166 + $0x58] sm:$0xf]
        %v269 = vld [vmem:[%s166 + $0x5c] sm:$0xf]
        %v270 = vld [vmem:[%s166 + $0x60] sm:$0xf]
        %v271 = vld [vmem:[%s166 + $0x64] sm:$0xf]
        %v272 = vld [vmem:[%s166 + $0x68] sm:$0xf]
        %v273 = vld [vmem:[%s166 + $0x6c] sm:$0xf]
        %v274 = vld [vmem:[%s166 + $0x70] sm:$0xf]
        %v275 = vld [vmem:[%s166 + $0x74] sm:$0xf]
        %v276 = vld [vmem:[%s166 + $0x78] sm:$0xf]
        %v277 = vld [vmem:[%s166 + $0x7c] sm:$0xf]
        %vm278 = vsmask.f32 256
        %vm279 = vsmask.f32 4368
        %vm280 = vmor %vm278, %vm279
        %v282 = vshrl.u32 %v246, 16
        %v284 = vrot.slane %v282, 7
        %v285 = vshll.u32 %v246, 16
        %v287 = vor.u32 %v284, %v285
        %v288 = vrot.slane %v284, 4
        %v290 = vshrl.u32 %v247, 16
        %v292 = vrot.slane %v290, 7
        %v293 = vshll.u32 %v247, 16
        %v295 = vor.u32 %v292, %v293
        %v296 = vsel %vm280, %v288, %v295
        %v297 = vrot.slane %v292, 4
        %v299 = vshrl.u32 %v248, 16
        %v301 = vrot.slane %v299, 7
        %v302 = vshll.u32 %v248, 16
        %v304 = vor.u32 %v301, %v302
        %v305 = vrot.slane %v301, 4
        %v307 = vshrl.u32 %v249, 16
        %v309 = vrot.slane %v307, 7
        %v310 = vshll.u32 %v249, 16
        %v312 = vor.u32 %v309, %v310
        %v313 = vsel %vm280, %v305, %v312
        %v314 = vrot.slane %v309, 4
        %v316 = vshrl.u32 %v250, 16
        %v318 = vrot.slane %v316, 7
        %v319 = vshll.u32 %v250, 16
        %v321 = vor.u32 %v318, %v319
        %v322 = vrot.slane %v318, 4
        %v324 = vshrl.u32 %v251, 16
        %v326 = vrot.slane %v324, 7
        %v327 = vshll.u32 %v251, 16
        %v329 = vor.u32 %v326, %v327
        %v330 = vsel %vm280, %v322, %v329
        %v331 = vrot.slane %v326, 4
        %v333 = vshrl.u32 %v252, 16
        %v335 = vrot.slane %v333, 7
        %v336 = vshll.u32 %v252, 16
        %v338 = vor.u32 %v335, %v336
        %v339 = vrot.slane %v335, 4
        %v341 = vshrl.u32 %v253, 16
        %v343 = vrot.slane %v341, 7
        %v344 = vshll.u32 %v253, 16
        %v346 = vor.u32 %v343, %v344
        %v347 = vsel %vm280, %v339, %v346
        %v348 = vrot.slane %v343, 4
        %v350 = vshrl.u32 %v254, 16
        %v352 = vrot.slane %v350, 7
        %v353 = vshll.u32 %v254, 16
        %v355 = vor.u32 %v352, %v353
        %v356 = vrot.slane %v352, 4
        %v358 = vshrl.u32 %v255, 16
        %v360 = vrot.slane %v358, 7
        %v361 = vshll.u32 %v255, 16
        %v363 = vor.u32 %v360, %v361
        %v364 = vsel %vm280, %v356, %v363
        %v365 = vrot.slane %v360, 4
        %v367 = vshrl.u32 %v256, 16
        %v369 = vrot.slane %v367, 7
        %v370 = vshll.u32 %v256, 16
        %v372 = vor.u32 %v369, %v370
        %v373 = vrot.slane %v369, 4
        %v375 = vshrl.u32 %v257, 16
        %v377 = vrot.slane %v375, 7
        %v378 = vshll.u32 %v257, 16
        %v380 = vor.u32 %v377, %v378
        %v381 = vsel %vm280, %v373, %v380
        %v382 = vrot.slane %v377, 4
        %v384 = vshrl.u32 %v258, 16
        %v386 = vrot.slane %v384, 7
        %v387 = vshll.u32 %v258, 16
        %v389 = vor.u32 %v386, %v387
        %v390 = vrot.slane %v386, 4
        %v392 = vshrl.u32 %v259, 16
        %v394 = vrot.slane %v392, 7
        %v395 = vshll.u32 %v259, 16
        %v397 = vor.u32 %v394, %v395
        %v398 = vsel %vm280, %v390, %v397
        %v399 = vrot.slane %v394, 4
        %v401 = vshrl.u32 %v260, 16
        %v403 = vrot.slane %v401, 7
        %v404 = vshll.u32 %v260, 16
        %v406 = vor.u32 %v403, %v404
        %v407 = vrot.slane %v403, 4
        %v409 = vshrl.u32 %v261, 16
        %v411 = vrot.slane %v409, 7
        %v412 = vshll.u32 %v261, 16
        %v414 = vor.u32 %v411, %v412
        %v415 = vsel %vm280, %v407, %v414
        %v416 = vrot.slane %v411, 4
        %v418 = vshrl.u32 %v262, 16
        %v420 = vrot.slane %v418, 7
        %v421 = vshll.u32 %v262, 16
        %v423 = vor.u32 %v420, %v421
        %v424 = vrot.slane %v420, 4
        %v426 = vshrl.u32 %v263, 16
        %v428 = vrot.slane %v426, 7
        %v429 = vshll.u32 %v263, 16
        %v431 = vor.u32 %v428, %v429
        %v432 = vsel %vm280, %v424, %v431
        %v433 = vrot.slane %v428, 4
        %v435 = vshrl.u32 %v264, 16
        %v437 = vrot.slane %v435, 7
        %v438 = vshll.u32 %v264, 16
        %v440 = vor.u32 %v437, %v438
        %v441 = vrot.slane %v437, 4
        %v443 = vshrl.u32 %v265, 16
        %v445 = vrot.slane %v443, 7
        %v446 = vshll.u32 %v265, 16
        %v448 = vor.u32 %v445, %v446
        %v449 = vsel %vm280, %v441, %v448
        %v450 = vrot.slane %v445, 4
        %v452 = vshrl.u32 %v266, 16
        %v454 = vrot.slane %v452, 7
        %v455 = vshll.u32 %v266, 16
        %v457 = vor.u32 %v454, %v455
        %v458 = vrot.slane %v454, 4
        %v460 = vshrl.u32 %v267, 16
        %v462 = vrot.slane %v460, 7
        %v463 = vshll.u32 %v267, 16
        %v465 = vor.u32 %v462, %v463
        %v466 = vsel %vm280, %v458, %v465
        %v467 = vrot.slane %v462, 4
        %v469 = vshrl.u32 %v268, 16
        %v471 = vrot.slane %v469, 7
        %v472 = vshll.u32 %v268, 16
        %v474 = vor.u32 %v471, %v472
        %v475 = vrot.slane %v471, 4
        %v477 = vshrl.u32 %v269, 16
        %v479 = vrot.slane %v477, 7
        %v480 = vshll.u32 %v269, 16
        %v482 = vor.u32 %v479, %v480
        %v483 = vsel %vm280, %v475, %v482
        %v484 = vrot.slane %v479, 4
        %v486 = vshrl.u32 %v270, 16
        %v488 = vrot.slane %v486, 7
        %v489 = vshll.u32 %v270, 16
        %v491 = vor.u32 %v488, %v489
        %v492 = vrot.slane %v488, 4
        %v494 = vshrl.u32 %v271, 16
        %v496 = vrot.slane %v494, 7
        %v497 = vshll.u32 %v271, 16
        %v499 = vor.u32 %v496, %v497
        %v500 = vsel %vm280, %v492, %v499
        %v501 = vrot.slane %v496, 4
        %v503 = vshrl.u32 %v272, 16
        %v505 = vrot.slane %v503, 7
        %v506 = vshll.u32 %v272, 16
        %v508 = vor.u32 %v505, %v506
        %v509 = vrot.slane %v505, 4
        %v511 = vshrl.u32 %v273, 16
        %v513 = vrot.slane %v511, 7
        %v514 = vshll.u32 %v273, 16
        %v516 = vor.u32 %v513, %v514
        %v517 = vsel %vm280, %v509, %v516
        %v518 = vrot.slane %v513, 4
        %v520 = vshrl.u32 %v274, 16
        %v522 = vrot.slane %v520, 7
        %v523 = vshll.u32 %v274, 16
        %v525 = vor.u32 %v522, %v523
        %v526 = vrot.slane %v522, 4
        %v528 = vshrl.u32 %v275, 16
        %v530 = vrot.slane %v528, 7
        %v531 = vshll.u32 %v275, 16
        %v533 = vor.u32 %v530, %v531
        %v534 = vsel %vm280, %v526, %v533
        %v535 = vrot.slane %v530, 4
        %v537 = vshrl.u32 %v276, 16
        %v539 = vrot.slane %v537, 7
        %v540 = vshll.u32 %v276, 16
        %v542 = vor.u32 %v539, %v540
        %v543 = vrot.slane %v539, 4
        %v545 = vshrl.u32 %v277, 16
        %v547 = vrot.slane %v545, 7
        %v548 = vshll.u32 %v277, 16
        %v550 = vor.u32 %v547, %v548
        %v551 = vsel %vm280, %v543, %v550
        %v552 = vrot.slane %v547, 4
        %s601 = scalar_lea.vmem [#allocation2], 12
        %vm602 = vcmask 125952
        %vm603 = vsmask.f32 7938
        %vm604 = vmand %vm602, %vm603
        %v605 = vld [vmem:[%s601] sm:$0xf]
        %v606 = vsel %vm604, %v287, %v605
        %607 = vst [vmem:[%s601] sm:$0xf] %v606
        %608 = vst.msk [vmem:[%s601 + $0x4] sm:$0xf] %vm190, %v296
        %vm609 = vcmask 122880
        %vm610 = vmand %vm609, %vm278
        %v611 = vld [vmem:[%s601 + $0x8] sm:$0x1]
        %v612 = vsel %vm610, %v297, %v611
        %613 = vst [vmem:[%s601 + $0x8] sm:$0x1] %v612
        %v614 = vld [vmem:[%s601 + $0xc] sm:$0xf]
        %v615 = vsel %vm604, %v304, %v614
        %616 = vst [vmem:[%s601 + $0xc] sm:$0xf] %v615
        %617 = vst.msk [vmem:[%s601 + $0x10] sm:$0xf] %vm190, %v313
        %v618 = vld [vmem:[%s601 + $0x14] sm:$0x1]
        %v619 = vsel %vm610, %v314, %v618
        %620 = vst [vmem:[%s601 + $0x14] sm:$0x1] %v619
        %v621 = vld [vmem:[%s601 + $0x18] sm:$0xf]
        %v622 = vsel %vm604, %v321, %v621
        %623 = vst [vmem:[%s601 + $0x18] sm:$0xf] %v622
        %624 = vst.msk [vmem:[%s601 + $0x1c] sm:$0xf] %vm190, %v330
        %v625 = vld [vmem:[%s601 + $0x20] sm:$0x1]
        %v626 = vsel %vm610, %v331, %v625
        %627 = vst [vmem:[%s601 + $0x20] sm:$0x1] %v626
        %v628 = vld [vmem:[%s601 + $0x24] sm:$0xf]
        %v629 = vsel %vm604, %v338, %v628
        %630 = vst [vmem:[%s601 + $0x24] sm:$0xf] %v629
        %631 = vst.msk [vmem:[%s601 + $0x28] sm:$0xf] %vm190, %v347
        %v632 = vld [vmem:[%s601 + $0x2c] sm:$0x1]
        %v633 = vsel %vm610, %v348, %v632
        %634 = vst [vmem:[%s601 + $0x2c] sm:$0x1] %v633
        %v635 = vld [vmem:[%s601 + $0x30] sm:$0xf]
        %v636 = vsel %vm604, %v355, %v635
        %637 = vst [vmem:[%s601 + $0x30] sm:$0xf] %v636
        %638 = vst.msk [vmem:[%s601 + $0x34] sm:$0xf] %vm190, %v364
        %v639 = vld [vmem:[%s601 + $0x38] sm:$0x1]
        %v640 = vsel %vm610, %v365, %v639
        %641 = vst [vmem:[%s601 + $0x38] sm:$0x1] %v640
        %v642 = vld [vmem:[%s601 + $0x3c] sm:$0xf]
        %v643 = vsel %vm604, %v372, %v642
        %644 = vst [vmem:[%s601 + $0x3c] sm:$0xf] %v643
        %645 = vst.msk [vmem:[%s601 + $0x40] sm:$0xf] %vm190, %v381
        %v646 = vld [vmem:[%s601 + $0x44] sm:$0x1]
        %v647 = vsel %vm610, %v382, %v646
        %648 = vst [vmem:[%s601 + $0x44] sm:$0x1] %v647
        %v649 = vld [vmem:[%s601 + $0x48] sm:$0xf]
        %v650 = vsel %vm604, %v389, %v649
        %651 = vst [vmem:[%s601 + $0x48] sm:$0xf] %v650
        %652 = vst.msk [vmem:[%s601 + $0x4c] sm:$0xf] %vm190, %v398
        %v653 = vld [vmem:[%s601 + $0x50] sm:$0x1]
        %v654 = vsel %vm610, %v399, %v653
        %655 = vst [vmem:[%s601 + $0x50] sm:$0x1] %v654
        %v656 = vld [vmem:[%s601 + $0x54] sm:$0xf]
        %v657 = vsel %vm604, %v406, %v656
        %658 = vst [vmem:[%s601 + $0x54] sm:$0xf] %v657
        %659 = vst.msk [vmem:[%s601 + $0x58] sm:$0xf] %vm190, %v415
        %v660 = vld [vmem:[%s601 + $0x5c] sm:$0x1]
        %v661 = vsel %vm610, %v416, %v660
        %662 = vst [vmem:[%s601 + $0x5c] sm:$0x1] %v661
        %v663 = vld [vmem:[%s601 + $0x60] sm:$0xf]
        %v664 = vsel %vm604, %v423, %v663
        %665 = vst [vmem:[%s601 + $0x60] sm:$0xf] %v664
        %666 = vst.msk [vmem:[%s601 + $0x64] sm:$0xf] %vm190, %v432
        %v667 = vld [vmem:[%s601 + $0x68] sm:$0x1]
        %v668 = vsel %vm610, %v433, %v667
        %669 = vst [vmem:[%s601 + $0x68] sm:$0x1] %v668
        %v670 = vld [vmem:[%s601 + $0x6c] sm:$0xf]
        %v671 = vsel %vm604, %v440, %v670
        %672 = vst [vmem:[%s601 + $0x6c] sm:$0xf] %v671
        %673 = vst.msk [vmem:[%s601 + $0x70] sm:$0xf] %vm190, %v449
        %v674 = vld [vmem:[%s601 + $0x74] sm:$0x1]
        %v675 = vsel %vm610, %v450, %v674
        %676 = vst [vmem:[%s601 + $0x74] sm:$0x1] %v675
        %v677 = vld [vmem:[%s601 + $0x78] sm:$0xf]
        %v678 = vsel %vm604, %v457, %v677
        %679 = vst [vmem:[%s601 + $0x78] sm:$0xf] %v678
        %680 = vst.msk [vmem:[%s601 + $0x7c] sm:$0xf] %vm190, %v466
        %v681 = vld [vmem:[%s601 + $0x80] sm:$0x1]
        %v682 = vsel %vm610, %v467, %v681
        %683 = vst [vmem:[%s601 + $0x80] sm:$0x1] %v682
        %v684 = vld [vmem:[%s601 + $0x84] sm:$0xf]
        %v685 = vsel %vm604, %v474, %v684
        %686 = vst [vmem:[%s601 + $0x84] sm:$0xf] %v685
        %687 = vst.msk [vmem:[%s601 + $0x88] sm:$0xf] %vm190, %v483
        %v688 = vld [vmem:[%s601 + $0x8c] sm:$0x1]
        %v689 = vsel %vm610, %v484, %v688
        %690 = vst [vmem:[%s601 + $0x8c] sm:$0x1] %v689
        %v691 = vld [vmem:[%s601 + $0x90] sm:$0xf]
        %v692 = vsel %vm604, %v491, %v691
        %693 = vst [vmem:[%s601 + $0x90] sm:$0xf] %v692
        %694 = vst.msk [vmem:[%s601 + $0x94] sm:$0xf] %vm190, %v500
        %v695 = vld [vmem:[%s601 + $0x98] sm:$0x1]
        %v696 = vsel %vm610, %v501, %v695
        %697 = vst [vmem:[%s601 + $0x98] sm:$0x1] %v696
        %v698 = vld [vmem:[%s601 + $0x9c] sm:$0xf]
        %v699 = vsel %vm604, %v508, %v698
        %700 = vst [vmem:[%s601 + $0x9c] sm:$0xf] %v699
        %701 = vst.msk [vmem:[%s601 + $0xa0] sm:$0xf] %vm190, %v517
        %v702 = vld [vmem:[%s601 + $0xa4] sm:$0x1]
        %v703 = vsel %vm610, %v518, %v702
        %704 = vst [vmem:[%s601 + $0xa4] sm:$0x1] %v703
        %v705 = vld [vmem:[%s601 + $0xa8] sm:$0xf]
        %v706 = vsel %vm604, %v525, %v705
        %707 = vst [vmem:[%s601 + $0xa8] sm:$0xf] %v706
        %708 = vst.msk [vmem:[%s601 + $0xac] sm:$0xf] %vm190, %v534
        %v709 = vld [vmem:[%s601 + $0xb0] sm:$0x1]
        %v710 = vsel %vm610, %v535, %v709
        %711 = vst [vmem:[%s601 + $0xb0] sm:$0x1] %v710
        %v712 = vld [vmem:[%s601 + $0xb4] sm:$0xf]
        %v713 = vsel %vm604, %v542, %v712
        %714 = vst [vmem:[%s601 + $0xb4] sm:$0xf] %v713
        %715 = vst.msk [vmem:[%s601 + $0xb8] sm:$0xf] %vm190, %v551
        %v716 = vld [vmem:[%s601 + $0xbc] sm:$0x1]
        %v717 = vsel %vm610, %v552, %v716
        %718 = vst [vmem:[%s601 + $0xbc] sm:$0x1] %v717
        %v719 = vld [vmem:[#allocation2] sm:$0xf]
        %v720 = vld [vmem:[#allocation2 + $0x4] sm:$0xf]
        %v721 = vld [vmem:[#allocation2 + $0xc] sm:$0xf]
        %v722 = vld [vmem:[#allocation2 + $0x10] sm:$0xf]
        %v723 = vld [vmem:[#allocation2 + $0x18] sm:$0xf]
        %v724 = vld [vmem:[#allocation2 + $0x1c] sm:$0xf]
        %v725 = vld [vmem:[#allocation2 + $0x24] sm:$0xf]
        %v726 = vld [vmem:[#allocation2 + $0x28] sm:$0xf]
        %v727 = vld [vmem:[#allocation2 + $0x30] sm:$0xf]
        %v728 = vld [vmem:[#allocation2 + $0x34] sm:$0xf]
        %v729 = vld [vmem:[#allocation2 + $0x3c] sm:$0xf]
        %v730 = vld [vmem:[#allocation2 + $0x40] sm:$0xf]
        %v731 = vld [vmem:[#allocation2 + $0x48] sm:$0xf]
        %v732 = vld [vmem:[#allocation2 + $0x4c] sm:$0xf]
        %v733 = vld [vmem:[#allocation2 + $0x54] sm:$0xf]
        %v734 = vld [vmem:[#allocation2 + $0x58] sm:$0xf]
        %v735 = vld [vmem:[#allocation2 + $0x60] sm:$0xf]
        %v736 = vld [vmem:[#allocation2 + $0x64] sm:$0xf]
        %v737 = vld [vmem:[#allocation2 + $0x6c] sm:$0xf]
        %v738 = vld [vmem:[#allocation2 + $0x70] sm:$0xf]
        %v739 = vld [vmem:[#allocation2 + $0x78] sm:$0xf]
        %v740 = vld [vmem:[#allocation2 + $0x7c] sm:$0xf]
        %v741 = vld [vmem:[#allocation2 + $0x84] sm:$0xf]
        %v742 = vld [vmem:[#allocation2 + $0x88] sm:$0xf]
        %v743 = vld [vmem:[#allocation2 + $0x90] sm:$0xf]
        %v744 = vld [vmem:[#allocation2 + $0x94] sm:$0xf]
        %v745 = vld [vmem:[#allocation2 + $0x9c] sm:$0xf]
        %v746 = vld [vmem:[#allocation2 + $0xa0] sm:$0xf]
        %v747 = vld [vmem:[#allocation2 + $0xa8] sm:$0xf]
        %v748 = vld [vmem:[#allocation2 + $0xac] sm:$0xf]
        %v749 = vld [vmem:[#allocation2 + $0xb4] sm:$0xf]
        %v750 = vld [vmem:[#allocation2 + $0xb8] sm:$0xf]
        %v751 = vld [vmem:[#allocation2 + $0x8] sm:$0x1]
        %v752 = vld [vmem:[#allocation2 + $0x14] sm:$0x1]
        %v753 = vld [vmem:[#allocation2 + $0x20] sm:$0x1]
        %v754 = vld [vmem:[#allocation2 + $0x2c] sm:$0x1]
        %v755 = vld [vmem:[#allocation2 + $0x38] sm:$0x1]
        %v756 = vld [vmem:[#allocation2 + $0x44] sm:$0x1]
        %v757 = vld [vmem:[#allocation2 + $0x50] sm:$0x1]
        %v758 = vld [vmem:[#allocation2 + $0x5c] sm:$0x1]
        %v759 = vld [vmem:[#allocation2 + $0x68] sm:$0x1]
        %v760 = vld [vmem:[#allocation2 + $0x74] sm:$0x1]
        %v761 = vld [vmem:[#allocation2 + $0x80] sm:$0x1]
        %v762 = vld [vmem:[#allocation2 + $0x8c] sm:$0x1]
        %v763 = vld [vmem:[#allocation2 + $0x98] sm:$0x1]
        %v764 = vld [vmem:[#allocation2 + $0xa4] sm:$0x1]
        %v765 = vld [vmem:[#allocation2 + $0xb0] sm:$0x1]
        %v766 = vld [vmem:[#allocation2 + $0xbc] sm:$0x1]
        %v767 = vld [vmem:[#allocation2] sm:$0xe]
        %v768 = vld [vmem:[#allocation2 + $0xc] sm:$0xe]
        %v769 = vld [vmem:[#allocation2 + $0x18] sm:$0xe]
        %v770 = vld [vmem:[#allocation2 + $0x24] sm:$0xe]
        %v771 = vld [vmem:[#allocation2 + $0x30] sm:$0xe]
        %v772 = vld [vmem:[#allocation2 + $0x3c] sm:$0xe]
        %v773 = vld [vmem:[#allocation2 + $0x48] sm:$0xe]
        %v774 = vld [vmem:[#allocation2 + $0x54] sm:$0xe]
        %v775 = vld [vmem:[#allocation2 + $0x60] sm:$0xe]
        %v776 = vld [vmem:[#allocation2 + $0x6c] sm:$0xe]
        %v777 = vld [vmem:[#allocation2 + $0x78] sm:$0xe]
        %v778 = vld [vmem:[#allocation2 + $0x84] sm:$0xe]
        %v779 = vld [vmem:[#allocation2 + $0x90] sm:$0xe]
        %v780 = vld [vmem:[#allocation2 + $0x9c] sm:$0xe]
        %v781 = vld [vmem:[#allocation2 + $0xa8] sm:$0xe]
        %v782 = vld [vmem:[#allocation2 + $0xb4] sm:$0xe]
        %v783 = vld [vmem:[%s601] sm:$0xf]
        %v784 = vld [vmem:[%s601 + $0x4] sm:$0xf]
        %v785 = vld [vmem:[%s601 + $0xc] sm:$0xf]
        %v786 = vld [vmem:[%s601 + $0x10] sm:$0xf]
        %v787 = vld [vmem:[%s601 + $0x18] sm:$0xf]
        %v788 = vld [vmem:[%s601 + $0x1c] sm:$0xf]
        %v789 = vld [vmem:[%s601 + $0x24] sm:$0xf]
        %v790 = vld [vmem:[%s601 + $0x28] sm:$0xf]
        %v791 = vld [vmem:[%s601 + $0x30] sm:$0xf]
        %v792 = vld [vmem:[%s601 + $0x34] sm:$0xf]
        %v793 = vld [vmem:[%s601 + $0x3c] sm:$0xf]
        %v794 = vld [vmem:[%s601 + $0x40] sm:$0xf]
        %v795 = vld [vmem:[%s601 + $0x48] sm:$0xf]
        %v796 = vld [vmem:[%s601 + $0x4c] sm:$0xf]
        %v797 = vld [vmem:[%s601 + $0x54] sm:$0xf]
        %v798 = vld [vmem:[%s601 + $0x58] sm:$0xf]
        %v799 = vld [vmem:[%s601 + $0x60] sm:$0xf]
        %v800 = vld [vmem:[%s601 + $0x64] sm:$0xf]
        %v801 = vld [vmem:[%s601 + $0x6c] sm:$0xf]
        %v802 = vld [vmem:[%s601 + $0x70] sm:$0xf]
        %v803 = vld [vmem:[%s601 + $0x78] sm:$0xf]
        %v804 = vld [vmem:[%s601 + $0x7c] sm:$0xf]
        %v805 = vld [vmem:[%s601 + $0x84] sm:$0xf]
        %v806 = vld [vmem:[%s601 + $0x88] sm:$0xf]
        %v807 = vld [vmem:[%s601 + $0x90] sm:$0xf]
        %v808 = vld [vmem:[%s601 + $0x94] sm:$0xf]
        %v809 = vld [vmem:[%s601 + $0x9c] sm:$0xf]
        %v810 = vld [vmem:[%s601 + $0xa0] sm:$0xf]
        %v811 = vld [vmem:[%s601 + $0xa8] sm:$0xf]
        %v812 = vld [vmem:[%s601 + $0xac] sm:$0xf]
        %v813 = vld [vmem:[%s601 + $0xb4] sm:$0xf]
        %v814 = vld [vmem:[%s601 + $0xb8] sm:$0xf]
        %v815 = vld [vmem:[%s601 + $0x8] sm:$0x1]
        %v816 = vld [vmem:[%s601 + $0x14] sm:$0x1]
        %v817 = vld [vmem:[%s601 + $0x20] sm:$0x1]
        %v818 = vld [vmem:[%s601 + $0x2c] sm:$0x1]
        %v819 = vld [vmem:[%s601 + $0x38] sm:$0x1]
        %v820 = vld [vmem:[%s601 + $0x44] sm:$0x1]
        %v821 = vld [vmem:[%s601 + $0x50] sm:$0x1]
        %v822 = vld [vmem:[%s601 + $0x5c] sm:$0x1]
        %v823 = vld [vmem:[%s601 + $0x68] sm:$0x1]
        %v824 = vld [vmem:[%s601 + $0x74] sm:$0x1]
        %v825 = vld [vmem:[%s601 + $0x80] sm:$0x1]
        %v826 = vld [vmem:[%s601 + $0x8c] sm:$0x1]
        %v827 = vld [vmem:[%s601 + $0x98] sm:$0x1]
        %v828 = vld [vmem:[%s601 + $0xa4] sm:$0x1]
        %v829 = vld [vmem:[%s601 + $0xb0] sm:$0x1]
        %v830 = vld [vmem:[%s601 + $0xbc] sm:$0x1]
        %v831 = vld [vmem:[%s601] sm:$0xe]
        %v832 = vld [vmem:[%s601 + $0xc] sm:$0xe]
        %v833 = vld [vmem:[%s601 + $0x18] sm:$0xe]
        %v834 = vld [vmem:[%s601 + $0x24] sm:$0xe]
        %v835 = vld [vmem:[%s601 + $0x30] sm:$0xe]
        %v836 = vld [vmem:[%s601 + $0x3c] sm:$0xe]
        %v837 = vld [vmem:[%s601 + $0x48] sm:$0xe]
        %v838 = vld [vmem:[%s601 + $0x54] sm:$0xe]
        %v839 = vld [vmem:[%s601 + $0x60] sm:$0xe]
        %v840 = vld [vmem:[%s601 + $0x6c] sm:$0xe]
        %v841 = vld [vmem:[%s601 + $0x78] sm:$0xe]
        %v842 = vld [vmem:[%s601 + $0x84] sm:$0xe]
        %v843 = vld [vmem:[%s601 + $0x90] sm:$0xe]
        %v844 = vld [vmem:[%s601 + $0x9c] sm:$0xe]
        %v845 = vld [vmem:[%s601 + $0xa8] sm:$0xe]
        %v846 = vld [vmem:[%s601 + $0xb4] sm:$0xe]
        %s847 = scalar_lea.vmem [#allocation2], 24
        %v848 = vld [vmem:[%s847] sm:$0xf]
        %v849 = vld [vmem:[%s847 + $0x4] sm:$0xf]
        %v850 = vld [vmem:[%s847 + $0xc] sm:$0xf]
        %v851 = vld [vmem:[%s847 + $0x10] sm:$0xf]
        %v852 = vld [vmem:[%s847 + $0x18] sm:$0xf]
        %v853 = vld [vmem:[%s847 + $0x1c] sm:$0xf]
        %v854 = vld [vmem:[%s847 + $0x24] sm:$0xf]
        %v855 = vld [vmem:[%s847 + $0x28] sm:$0xf]
        %v856 = vld [vmem:[%s847 + $0x30] sm:$0xf]
        %v857 = vld [vmem:[%s847 + $0x34] sm:$0xf]
        %v858 = vld [vmem:[%s847 + $0x3c] sm:$0xf]
        %v859 = vld [vmem:[%s847 + $0x40] sm:$0xf]
        %v860 = vld [vmem:[%s847 + $0x48] sm:$0xf]
        %v861 = vld [vmem:[%s847 + $0x4c] sm:$0xf]
        %v862 = vld [vmem:[%s847 + $0x54] sm:$0xf]
        %v863 = vld [vmem:[%s847 + $0x58] sm:$0xf]
        %v864 = vld [vmem:[%s847 + $0x60] sm:$0xf]
        %v865 = vld [vmem:[%s847 + $0x64] sm:$0xf]
        %v866 = vld [vmem:[%s847 + $0x6c] sm:$0xf]
        %v867 = vld [vmem:[%s847 + $0x70] sm:$0xf]
        %v868 = vld [vmem:[%s847 + $0x78] sm:$0xf]
        %v869 = vld [vmem:[%s847 + $0x7c] sm:$0xf]
        %v870 = vld [vmem:[%s847 + $0x84] sm:$0xf]
        %v871 = vld [vmem:[%s847 + $0x88] sm:$0xf]
        %v872 = vld [vmem:[%s847 + $0x90] sm:$0xf]
        %v873 = vld [vmem:[%s847 + $0x94] sm:$0xf]
        %v874 = vld [vmem:[%s847 + $0x9c] sm:$0xf]
        %v875 = vld [vmem:[%s847 + $0xa0] sm:$0xf]
        %v876 = vld [vmem:[%s847 + $0xa8] sm:$0xf]
        %v877 = vld [vmem:[%s847 + $0xac] sm:$0xf]
        %v878 = vld [vmem:[%s847 + $0xb4] sm:$0xf]
        %v879 = vld [vmem:[%s847 + $0xb8] sm:$0xf]
        %v880 = vld [vmem:[%s847 + $0x8] sm:$0x1]
        %v881 = vld [vmem:[%s847 + $0x14] sm:$0x1]
        %v882 = vld [vmem:[%s847 + $0x20] sm:$0x1]
        %v883 = vld [vmem:[%s847 + $0x2c] sm:$0x1]
        %v884 = vld [vmem:[%s847 + $0x38] sm:$0x1]
        %v885 = vld [vmem:[%s847 + $0x44] sm:$0x1]
        %v886 = vld [vmem:[%s847 + $0x50] sm:$0x1]
        %v887 = vld [vmem:[%s847 + $0x5c] sm:$0x1]
        %v888 = vld [vmem:[%s847 + $0x68] sm:$0x1]
        %v889 = vld [vmem:[%s847 + $0x74] sm:$0x1]
        %v890 = vld [vmem:[%s847 + $0x80] sm:$0x1]
        %v891 = vld [vmem:[%s847 + $0x8c] sm:$0x1]
        %v892 = vld [vmem:[%s847 + $0x98] sm:$0x1]
        %v893 = vld [vmem:[%s847 + $0xa4] sm:$0x1]
        %v894 = vld [vmem:[%s847 + $0xb0] sm:$0x1]
        %v895 = vld [vmem:[%s847 + $0xbc] sm:$0x1]
        %v896 = vld [vmem:[%s847] sm:$0xe]
        %v897 = vld [vmem:[%s847 + $0xc] sm:$0xe]
        %v898 = vld [vmem:[%s847 + $0x18] sm:$0xe]
        %v899 = vld [vmem:[%s847 + $0x24] sm:$0xe]
        %v900 = vld [vmem:[%s847 + $0x30] sm:$0xe]
        %v901 = vld [vmem:[%s847 + $0x3c] sm:$0xe]
        %v902 = vld [vmem:[%s847 + $0x48] sm:$0xe]
        %v903 = vld [vmem:[%s847 + $0x54] sm:$0xe]
        %v904 = vld [vmem:[%s847 + $0x60] sm:$0xe]
        %v905 = vld [vmem:[%s847 + $0x6c] sm:$0xe]
        %v906 = vld [vmem:[%s847 + $0x78] sm:$0xe]
        %v907 = vld [vmem:[%s847 + $0x84] sm:$0xe]
        %v908 = vld [vmem:[%s847 + $0x90] sm:$0xe]
        %v909 = vld [vmem:[%s847 + $0x9c] sm:$0xe]
        %v910 = vld [vmem:[%s847 + $0xa8] sm:$0xe]
        %v911 = vld [vmem:[%s847 + $0xb4] sm:$0xe]
        %v944 = vunpack.c.l.b16 %v719
        %v945 = vunpack.c.l.b16 %v720
        %v946 = vunpack.c.l.b16 %v721
        %v947 = vunpack.c.l.b16 %v722
        %v948 = vunpack.c.l.b16 %v723
        %v949 = vunpack.c.l.b16 %v724
        %v950 = vunpack.c.l.b16 %v725
        %v951 = vunpack.c.l.b16 %v726
        %v952 = vunpack.c.l.b16 %v727
        %v953 = vunpack.c.l.b16 %v728
        %v954 = vunpack.c.l.b16 %v729
        %v955 = vunpack.c.l.b16 %v730
        %v956 = vunpack.c.l.b16 %v731
        %v957 = vunpack.c.l.b16 %v732
        %v958 = vunpack.c.l.b16 %v733
        %v959 = vunpack.c.l.b16 %v734
        %v960 = vunpack.c.l.b16 %v735
        %v961 = vunpack.c.l.b16 %v736
        %v962 = vunpack.c.l.b16 %v737
        %v963 = vunpack.c.l.b16 %v738
        %v964 = vunpack.c.l.b16 %v739
        %v965 = vunpack.c.l.b16 %v740
        %v966 = vunpack.c.l.b16 %v741
        %v967 = vunpack.c.l.b16 %v742
        %v968 = vunpack.c.l.b16 %v743
        %v969 = vunpack.c.l.b16 %v744
        %v970 = vunpack.c.l.b16 %v745
        %v971 = vunpack.c.l.b16 %v746
        %v972 = vunpack.c.l.b16 %v747
        %v973 = vunpack.c.l.b16 %v748
        %v974 = vunpack.c.l.b16 %v749
        %v975 = vunpack.c.l.b16 %v750
        %v976 = vpack.c.b16 %v945, %v944
        %v977 = vpack.c.b16 %v947, %v946
        %v978 = vpack.c.b16 %v949, %v948
        %v979 = vpack.c.b16 %v951, %v950
        %v980 = vpack.c.b16 %v953, %v952
        %v981 = vpack.c.b16 %v955, %v954
        %v982 = vpack.c.b16 %v957, %v956
        %v983 = vpack.c.b16 %v959, %v958
        %v984 = vpack.c.b16 %v961, %v960
        %v985 = vpack.c.b16 %v963, %v962
        %v986 = vpack.c.b16 %v965, %v964
        %v987 = vpack.c.b16 %v967, %v966
        %v988 = vpack.c.b16 %v969, %v968
        %v989 = vpack.c.b16 %v971, %v970
        %v990 = vpack.c.b16 %v973, %v972
        %v991 = vpack.c.b16 %v975, %v974
        %v1008 = vunpack.c.l.b16 %v751
        %v1009 = vunpack.c.l.b16 %v752
        %v1010 = vunpack.c.l.b16 %v753
        %v1011 = vunpack.c.l.b16 %v754
        %v1012 = vunpack.c.l.b16 %v755
        %v1013 = vunpack.c.l.b16 %v756
        %v1014 = vunpack.c.l.b16 %v757
        %v1015 = vunpack.c.l.b16 %v758
        %v1016 = vunpack.c.l.b16 %v759
        %v1017 = vunpack.c.l.b16 %v760
        %v1018 = vunpack.c.l.b16 %v761
        %v1019 = vunpack.c.l.b16 %v762
        %v1020 = vunpack.c.l.b16 %v763
        %v1021 = vunpack.c.l.b16 %v764
        %v1022 = vunpack.c.l.b16 %v765
        %v1023 = vunpack.c.l.b16 %v766
        %v1024 = vpack.c.b16 %v1008, %v1008
        %v1025 = vpack.c.b16 %v1009, %v1009
        %v1026 = vpack.c.b16 %v1010, %v1010
        %v1027 = vpack.c.b16 %v1011, %v1011
        %v1028 = vpack.c.b16 %v1012, %v1012
        %v1029 = vpack.c.b16 %v1013, %v1013
        %v1030 = vpack.c.b16 %v1014, %v1014
        %v1031 = vpack.c.b16 %v1015, %v1015
        %v1032 = vpack.c.b16 %v1016, %v1016
        %v1033 = vpack.c.b16 %v1017, %v1017
        %v1034 = vpack.c.b16 %v1018, %v1018
        %v1035 = vpack.c.b16 %v1019, %v1019
        %v1036 = vpack.c.b16 %v1020, %v1020
        %v1037 = vpack.c.b16 %v1021, %v1021
        %v1038 = vpack.c.b16 %v1022, %v1022
        %v1039 = vpack.c.b16 %v1023, %v1023
        %vm1040 = vsmask.f32 7424
        %v1042 = vshrl.u32 %v976, 16
        %v1044 = vshll.u32 %v976, 16
        %v1046 = vrot.slane %v1044, 1
        %v1047 = vor.u32 %v1042, %v1046
        %v1049 = vshll.u32 %v1024, 16
        %v1051 = vrot.slane %v1049, 1
        %v1052 = vsel %vm1040, %v1047, %v1051
        %v1054 = vshrl.u32 %v977, 16
        %v1056 = vshll.u32 %v977, 16
        %v1058 = vrot.slane %v1056, 1
        %v1059 = vor.u32 %v1054, %v1058
        %v1061 = vshll.u32 %v1025, 16
        %v1063 = vrot.slane %v1061, 1
        %v1064 = vsel %vm1040, %v1059, %v1063
        %v1066 = vshrl.u32 %v978, 16
        %v1068 = vshll.u32 %v978, 16
        %v1070 = vrot.slane %v1068, 1
        %v1071 = vor.u32 %v1066, %v1070
        %v1073 = vshll.u32 %v1026, 16
        %v1075 = vrot.slane %v1073, 1
        %v1076 = vsel %vm1040, %v1071, %v1075
        %v1078 = vshrl.u32 %v979, 16
        %v1080 = vshll.u32 %v979, 16
        %v1082 = vrot.slane %v1080, 1
        %v1083 = vor.u32 %v1078, %v1082
        %v1085 = vshll.u32 %v1027, 16
        %v1087 = vrot.slane %v1085, 1
        %v1088 = vsel %vm1040, %v1083, %v1087
        %v1090 = vshrl.u32 %v980, 16
        %v1092 = vshll.u32 %v980, 16
        %v1094 = vrot.slane %v1092, 1
        %v1095 = vor.u32 %v1090, %v1094
        %v1097 = vshll.u32 %v1028, 16
        %v1099 = vrot.slane %v1097, 1
        %v1100 = vsel %vm1040, %v1095, %v1099
        %v1102 = vshrl.u32 %v981, 16
        %v1104 = vshll.u32 %v981, 16
        %v1106 = vrot.slane %v1104, 1
        %v1107 = vor.u32 %v1102, %v1106
        %v1109 = vshll.u32 %v1029, 16
        %v1111 = vrot.slane %v1109, 1
        %v1112 = vsel %vm1040, %v1107, %v1111
        %v1114 = vshrl.u32 %v982, 16
        %v1116 = vshll.u32 %v982, 16
        %v1118 = vrot.slane %v1116, 1
        %v1119 = vor.u32 %v1114, %v1118
        %v1121 = vshll.u32 %v1030, 16
        %v1123 = vrot.slane %v1121, 1
        %v1124 = vsel %vm1040, %v1119, %v1123
        %v1126 = vshrl.u32 %v983, 16
        %v1128 = vshll.u32 %v983, 16
        %v1130 = vrot.slane %v1128, 1
        %v1131 = vor.u32 %v1126, %v1130
        %v1133 = vshll.u32 %v1031, 16
        %v1135 = vrot.slane %v1133, 1
        %v1136 = vsel %vm1040, %v1131, %v1135
        %v1138 = vshrl.u32 %v984, 16
        %v1140 = vshll.u32 %v984, 16
        %v1142 = vrot.slane %v1140, 1
        %v1143 = vor.u32 %v1138, %v1142
        %v1145 = vshll.u32 %v1032, 16
        %v1147 = vrot.slane %v1145, 1
        %v1148 = vsel %vm1040, %v1143, %v1147
        %v1150 = vshrl.u32 %v985, 16
        %v1152 = vshll.u32 %v985, 16
        %v1154 = vrot.slane %v1152, 1
        %v1155 = vor.u32 %v1150, %v1154
        %v1157 = vshll.u32 %v1033, 16
        %v1159 = vrot.slane %v1157, 1
        %v1160 = vsel %vm1040, %v1155, %v1159
        %v1162 = vshrl.u32 %v986, 16
        %v1164 = vshll.u32 %v986, 16
        %v1166 = vrot.slane %v1164, 1
        %v1167 = vor.u32 %v1162, %v1166
        %v1169 = vshll.u32 %v1034, 16
        %v1171 = vrot.slane %v1169, 1
        %v1172 = vsel %vm1040, %v1167, %v1171
        %v1174 = vshrl.u32 %v987, 16
        %v1176 = vshll.u32 %v987, 16
        %v1178 = vrot.slane %v1176, 1
        %v1179 = vor.u32 %v1174, %v1178
        %v1181 = vshll.u32 %v1035, 16
        %v1183 = vrot.slane %v1181, 1
        %v1184 = vsel %vm1040, %v1179, %v1183
        %v1186 = vshrl.u32 %v988, 16
        %v1188 = vshll.u32 %v988, 16
        %v1190 = vrot.slane %v1188, 1
        %v1191 = vor.u32 %v1186, %v1190
        %v1193 = vshll.u32 %v1036, 16
        %v1195 = vrot.slane %v1193, 1
        %v1196 = vsel %vm1040, %v1191, %v1195
        %v1198 = vshrl.u32 %v989, 16
        %v1200 = vshll.u32 %v989, 16
        %v1202 = vrot.slane %v1200, 1
        %v1203 = vor.u32 %v1198, %v1202
        %v1205 = vshll.u32 %v1037, 16
        %v1207 = vrot.slane %v1205, 1
        %v1208 = vsel %vm1040, %v1203, %v1207
        %v1210 = vshrl.u32 %v990, 16
        %v1212 = vshll.u32 %v990, 16
        %v1214 = vrot.slane %v1212, 1
        %v1215 = vor.u32 %v1210, %v1214
        %v1217 = vshll.u32 %v1038, 16
        %v1219 = vrot.slane %v1217, 1
        %v1220 = vsel %vm1040, %v1215, %v1219
        %v1222 = vshrl.u32 %v991, 16
        %v1224 = vshll.u32 %v991, 16
        %v1226 = vrot.slane %v1224, 1
        %v1227 = vor.u32 %v1222, %v1226
        %v1229 = vshll.u32 %v1039, 16
        %v1231 = vrot.slane %v1229, 1
        %v1232 = vsel %vm1040, %v1227, %v1231
        %1233 = vrot.lane.b32.xlu0 %v1052, 16
        %v1234 = vpop.permute.xlu0 %1233
        %1235 = vrot.lane.b32.xlu0 %v1064, 16
        %v1236 = vpop.permute.xlu0 %1235
        %1237 = vrot.lane.b32.xlu0 %v1076, 16
        %v1238 = vpop.permute.xlu0 %1237
        %1239 = vrot.lane.b32.xlu0 %v1088, 16
        %v1240 = vpop.permute.xlu0 %1239
        %1241 = vrot.lane.b32.xlu0 %v1100, 16
        %v1242 = vpop.permute.xlu0 %1241
        %1243 = vrot.lane.b32.xlu0 %v1112, 16
        %v1244 = vpop.permute.xlu0 %1243
        %1245 = vrot.lane.b32.xlu0 %v1124, 16
        %v1246 = vpop.permute.xlu0 %1245
        %1247 = vrot.lane.b32.xlu0 %v1136, 16
        %v1248 = vpop.permute.xlu0 %1247
        %1249 = vrot.lane.b32.xlu0 %v1148, 16
        %v1250 = vpop.permute.xlu0 %1249
        %1251 = vrot.lane.b32.xlu0 %v1160, 16
        %v1252 = vpop.permute.xlu0 %1251
        %1253 = vrot.lane.b32.xlu0 %v1172, 16
        %v1254 = vpop.permute.xlu0 %1253
        %1255 = vrot.lane.b32.xlu0 %v1184, 16
        %v1256 = vpop.permute.xlu0 %1255
        %1257 = vrot.lane.b32.xlu0 %v1196, 16
        %v1258 = vpop.permute.xlu0 %1257
        %1259 = vrot.lane.b32.xlu0 %v1208, 16
        %v1260 = vpop.permute.xlu0 %1259
        %1261 = vrot.lane.b32.xlu0 %v1220, 16
        %v1262 = vpop.permute.xlu0 %1261
        %1263 = vrot.lane.b32.xlu0 %v1232, 16
        %v1264 = vpop.permute.xlu0 %1263
        %v1281 = vunpack.c.l.b16 %v767
        %v1282 = vunpack.c.l.b16 %v768
        %v1283 = vunpack.c.l.b16 %v769
        %v1284 = vunpack.c.l.b16 %v770
        %v1285 = vunpack.c.l.b16 %v771
        %v1286 = vunpack.c.l.b16 %v772
        %v1287 = vunpack.c.l.b16 %v773
        %v1288 = vunpack.c.l.b16 %v774
        %v1289 = vunpack.c.l.b16 %v775
        %v1290 = vunpack.c.l.b16 %v776
        %v1291 = vunpack.c.l.b16 %v777
        %v1292 = vunpack.c.l.b16 %v778
        %v1293 = vunpack.c.l.b16 %v779
        %v1294 = vunpack.c.l.b16 %v780
        %v1295 = vunpack.c.l.b16 %v781
        %v1296 = vunpack.c.l.b16 %v782
        %v1297 = vpack.c.b16 %v945, %v1281
        %v1298 = vpack.c.b16 %v947, %v1282
        %v1299 = vpack.c.b16 %v949, %v1283
        %v1300 = vpack.c.b16 %v951, %v1284
        %v1301 = vpack.c.b16 %v953, %v1285
        %v1302 = vpack.c.b16 %v955, %v1286
        %v1303 = vpack.c.b16 %v957, %v1287
        %v1304 = vpack.c.b16 %v959, %v1288
        %v1305 = vpack.c.b16 %v961, %v1289
        %v1306 = vpack.c.b16 %v963, %v1290
        %v1307 = vpack.c.b16 %v965, %v1291
        %v1308 = vpack.c.b16 %v967, %v1292
        %v1309 = vpack.c.b16 %v969, %v1293
        %v1310 = vpack.c.b16 %v971, %v1294
        %v1311 = vpack.c.b16 %v973, %v1295
        %v1312 = vpack.c.b16 %v975, %v1296
        %vm1313 = vcmask 1046528
        %v1314 = vrot.slane %v1297, 1
        %v1315 = vrot.slane %v1024, 1
        %v1316 = vsel %vm1313, %v1314, %v1315
        %v1317 = vrot.slane %v1298, 1
        %v1318 = vrot.slane %v1025, 1
        %v1319 = vsel %vm1313, %v1317, %v1318
        %v1320 = vrot.slane %v1299, 1
        %v1321 = vrot.slane %v1026, 1
        %v1322 = vsel %vm1313, %v1320, %v1321
        %v1323 = vrot.slane %v1300, 1
        %v1324 = vrot.slane %v1027, 1
        %v1325 = vsel %vm1313, %v1323, %v1324
        %v1326 = vrot.slane %v1301, 1
        %v1327 = vrot.slane %v1028, 1
        %v1328 = vsel %vm1313, %v1326, %v1327
        %v1329 = vrot.slane %v1302, 1
        %v1330 = vrot.slane %v1029, 1
        %v1331 = vsel %vm1313, %v1329, %v1330
        %v1332 = vrot.slane %v1303, 1
        %v1333 = vrot.slane %v1030, 1
        %v1334 = vsel %vm1313, %v1332, %v1333
        %v1335 = vrot.slane %v1304, 1
        %v1336 = vrot.slane %v1031, 1
        %v1337 = vsel %vm1313, %v1335, %v1336
        %v1338 = vrot.slane %v1305, 1
        %v1339 = vrot.slane %v1032, 1
        %v1340 = vsel %vm1313, %v1338, %v1339
        %v1341 = vrot.slane %v1306, 1
        %v1342 = vrot.slane %v1033, 1
        %v1343 = vsel %vm1313, %v1341, %v1342
        %v1344 = vrot.slane %v1307, 1
        %v1345 = vrot.slane %v1034, 1
        %v1346 = vsel %vm1313, %v1344, %v1345
        %v1347 = vrot.slane %v1308, 1
        %v1348 = vrot.slane %v1035, 1
        %v1349 = vsel %vm1313, %v1347, %v1348
        %v1350 = vrot.slane %v1309, 1
        %v1351 = vrot.slane %v1036, 1
        %v1352 = vsel %vm1313, %v1350, %v1351
        %v1353 = vrot.slane %v1310, 1
        %v1354 = vrot.slane %v1037, 1
        %v1355 = vsel %vm1313, %v1353, %v1354
        %v1356 = vrot.slane %v1311, 1
        %v1357 = vrot.slane %v1038, 1
        %v1358 = vsel %vm1313, %v1356, %v1357
        %v1359 = vrot.slane %v1312, 1
        %v1360 = vrot.slane %v1039, 1
        %v1361 = vsel %vm1313, %v1359, %v1360
        %1362 = vrot.lane.b32.xlu0 %v1316, 32
        %v1363 = vpop.permute.xlu0 %1362
        %1364 = vrot.lane.b32.xlu0 %v1319, 32
        %v1365 = vpop.permute.xlu0 %1364
        %1366 = vrot.lane.b32.xlu0 %v1322, 32
        %v1367 = vpop.permute.xlu0 %1366
        %1368 = vrot.lane.b32.xlu0 %v1325, 32
        %v1369 = vpop.permute.xlu0 %1368
        %1370 = vrot.lane.b32.xlu0 %v1328, 32
        %v1371 = vpop.permute.xlu0 %1370
        %1372 = vrot.lane.b32.xlu0 %v1331, 32
        %v1373 = vpop.permute.xlu0 %1372
        %1374 = vrot.lane.b32.xlu0 %v1334, 32
        %v1375 = vpop.permute.xlu0 %1374
        %1376 = vrot.lane.b32.xlu0 %v1337, 32
        %v1377 = vpop.permute.xlu0 %1376
        %1378 = vrot.lane.b32.xlu0 %v1340, 32
        %v1379 = vpop.permute.xlu0 %1378
        %1380 = vrot.lane.b32.xlu0 %v1343, 32
        %v1381 = vpop.permute.xlu0 %1380
        %1382 = vrot.lane.b32.xlu0 %v1346, 32
        %v1383 = vpop.permute.xlu0 %1382
        %1384 = vrot.lane.b32.xlu0 %v1349, 32
        %v1385 = vpop.permute.xlu0 %1384
        %1386 = vrot.lane.b32.xlu0 %v1352, 32
        %v1387 = vpop.permute.xlu0 %1386
        %1388 = vrot.lane.b32.xlu0 %v1355, 32
        %v1389 = vpop.permute.xlu0 %1388
        %1390 = vrot.lane.b32.xlu0 %v1358, 32
        %v1391 = vpop.permute.xlu0 %1390
        %1392 = vrot.lane.b32.xlu0 %v1361, 32
        %v1393 = vpop.permute.xlu0 %1392
        %v1426 = vunpack.c.l.b16 %v783
        %v1427 = vunpack.c.l.b16 %v784
        %v1428 = vunpack.c.l.b16 %v785
        %v1429 = vunpack.c.l.b16 %v786
        %v1430 = vunpack.c.l.b16 %v787
        %v1431 = vunpack.c.l.b16 %v788
        %v1432 = vunpack.c.l.b16 %v789
        %v1433 = vunpack.c.l.b16 %v790
        %v1434 = vunpack.c.l.b16 %v791
        %v1435 = vunpack.c.l.b16 %v792
        %v1436 = vunpack.c.l.b16 %v793
        %v1437 = vunpack.c.l.b16 %v794
        %v1438 = vunpack.c.l.b16 %v795
        %v1439 = vunpack.c.l.b16 %v796
        %v1440 = vunpack.c.l.b16 %v797
        %v1441 = vunpack.c.l.b16 %v798
        %v1442 = vunpack.c.l.b16 %v799
        %v1443 = vunpack.c.l.b16 %v800
        %v1444 = vunpack.c.l.b16 %v801
        %v1445 = vunpack.c.l.b16 %v802
        %v1446 = vunpack.c.l.b16 %v803
        %v1447 = vunpack.c.l.b16 %v804
        %v1448 = vunpack.c.l.b16 %v805
        %v1449 = vunpack.c.l.b16 %v806
        %v1450 = vunpack.c.l.b16 %v807
        %v1451 = vunpack.c.l.b16 %v808
        %v1452 = vunpack.c.l.b16 %v809
        %v1453 = vunpack.c.l.b16 %v810
        %v1454 = vunpack.c.l.b16 %v811
        %v1455 = vunpack.c.l.b16 %v812
        %v1456 = vunpack.c.l.b16 %v813
        %v1457 = vunpack.c.l.b16 %v814
        %v1458 = vpack.c.b16 %v1427, %v1426
        %v1459 = vpack.c.b16 %v1429, %v1428
        %v1460 = vpack.c.b16 %v1431, %v1430
        %v1461 = vpack.c.b16 %v1433, %v1432
        %v1462 = vpack.c.b16 %v1435, %v1434
        %v1463 = vpack.c.b16 %v1437, %v1436
        %v1464 = vpack.c.b16 %v1439, %v1438
        %v1465 = vpack.c.b16 %v1441, %v1440
        %v1466 = vpack.c.b16 %v1443, %v1442
        %v1467 = vpack.c.b16 %v1445, %v1444
        %v1468 = vpack.c.b16 %v1447, %v1446
        %v1469 = vpack.c.b16 %v1449, %v1448
        %v1470 = vpack.c.b16 %v1451, %v1450
        %v1471 = vpack.c.b16 %v1453, %v1452
        %v1472 = vpack.c.b16 %v1455, %v1454
        %v1473 = vpack.c.b16 %v1457, %v1456
        %1474 = vrot.lane.b32.xlu0 %v1458, 48
        %v1475 = vpop.permute.xlu0 %1474
        %1476 = vrot.lane.b32.xlu0 %v1459, 48
        %v1477 = vpop.permute.xlu0 %1476
        %1478 = vrot.lane.b32.xlu0 %v1460, 48
        %v1479 = vpop.permute.xlu0 %1478
        %1480 = vrot.lane.b32.xlu0 %v1461, 48
        %v1481 = vpop.permute.xlu0 %1480
        %1482 = vrot.lane.b32.xlu0 %v1462, 48
        %v1483 = vpop.permute.xlu0 %1482
        %1484 = vrot.lane.b32.xlu0 %v1463, 48
        %v1485 = vpop.permute.xlu0 %1484
        %1486 = vrot.lane.b32.xlu0 %v1464, 48
        %v1487 = vpop.permute.xlu0 %1486
        %1488 = vrot.lane.b32.xlu0 %v1465, 48
        %v1489 = vpop.permute.xlu0 %1488
        %1490 = vrot.lane.b32.xlu0 %v1466, 48
        %v1491 = vpop.permute.xlu0 %1490
        %1492 = vrot.lane.b32.xlu0 %v1467, 48
        %v1493 = vpop.permute.xlu0 %1492
        %1494 = vrot.lane.b32.xlu0 %v1468, 48
        %v1495 = vpop.permute.xlu0 %1494
        %1496 = vrot.lane.b32.xlu0 %v1469, 48
        %v1497 = vpop.permute.xlu0 %1496
        %1498 = vrot.lane.b32.xlu0 %v1470, 48
        %v1499 = vpop.permute.xlu0 %1498
        %1500 = vrot.lane.b32.xlu0 %v1471, 48
        %v1501 = vpop.permute.xlu0 %1500
        %1502 = vrot.lane.b32.xlu0 %v1472, 48
        %v1503 = vpop.permute.xlu0 %1502
        %1504 = vrot.lane.b32.xlu0 %v1473, 48
        %v1505 = vpop.permute.xlu0 %1504
        %v1522 = vunpack.c.l.b16 %v815
        %v1523 = vunpack.c.l.b16 %v816
        %v1524 = vunpack.c.l.b16 %v817
        %v1525 = vunpack.c.l.b16 %v818
        %v1526 = vunpack.c.l.b16 %v819
        %v1527 = vunpack.c.l.b16 %v820
        %v1528 = vunpack.c.l.b16 %v821
        %v1529 = vunpack.c.l.b16 %v822
        %v1530 = vunpack.c.l.b16 %v823
        %v1531 = vunpack.c.l.b16 %v824
        %v1532 = vunpack.c.l.b16 %v825
        %v1533 = vunpack.c.l.b16 %v826
        %v1534 = vunpack.c.l.b16 %v827
        %v1535 = vunpack.c.l.b16 %v828
        %v1536 = vunpack.c.l.b16 %v829
        %v1537 = vunpack.c.l.b16 %v830
        %v1538 = vpack.c.b16 %v1522, %v1522
        %v1539 = vpack.c.b16 %v1523, %v1523
        %v1540 = vpack.c.b16 %v1524, %v1524
        %v1541 = vpack.c.b16 %v1525, %v1525
        %v1542 = vpack.c.b16 %v1526, %v1526
        %v1543 = vpack.c.b16 %v1527, %v1527
        %v1544 = vpack.c.b16 %v1528, %v1528
        %v1545 = vpack.c.b16 %v1529, %v1529
        %v1546 = vpack.c.b16 %v1530, %v1530
        %v1547 = vpack.c.b16 %v1531, %v1531
        %v1548 = vpack.c.b16 %v1532, %v1532
        %v1549 = vpack.c.b16 %v1533, %v1533
        %v1550 = vpack.c.b16 %v1534, %v1534
        %v1551 = vpack.c.b16 %v1535, %v1535
        %v1552 = vpack.c.b16 %v1536, %v1536
        %v1553 = vpack.c.b16 %v1537, %v1537
        %v1555 = vshrl.u32 %v1458, 16
        %v1557 = vshll.u32 %v1458, 16
        %v1559 = vrot.slane %v1557, 1
        %v1560 = vor.u32 %v1555, %v1559
        %v1562 = vshll.u32 %v1538, 16
        %v1564 = vrot.slane %v1562, 1
        %v1565 = vsel %vm1040, %v1560, %v1564
        %v1567 = vshrl.u32 %v1459, 16
        %v1569 = vshll.u32 %v1459, 16
        %v1571 = vrot.slane %v1569, 1
        %v1572 = vor.u32 %v1567, %v1571
        %v1574 = vshll.u32 %v1539, 16
        %v1576 = vrot.slane %v1574, 1
        %v1577 = vsel %vm1040, %v1572, %v1576
        %v1579 = vshrl.u32 %v1460, 16
        %v1581 = vshll.u32 %v1460, 16
        %v1583 = vrot.slane %v1581, 1
        %v1584 = vor.u32 %v1579, %v1583
        %v1586 = vshll.u32 %v1540, 16
        %v1588 = vrot.slane %v1586, 1
        %v1589 = vsel %vm1040, %v1584, %v1588
        %v1591 = vshrl.u32 %v1461, 16
        %v1593 = vshll.u32 %v1461, 16
        %v1595 = vrot.slane %v1593, 1
        %v1596 = vor.u32 %v1591, %v1595
        %v1598 = vshll.u32 %v1541, 16
        %v1600 = vrot.slane %v1598, 1
        %v1601 = vsel %vm1040, %v1596, %v1600
        %v1603 = vshrl.u32 %v1462, 16
        %v1605 = vshll.u32 %v1462, 16
        %v1607 = vrot.slane %v1605, 1
        %v1608 = vor.u32 %v1603, %v1607
        %v1610 = vshll.u32 %v1542, 16
        %v1612 = vrot.slane %v1610, 1
        %v1613 = vsel %vm1040, %v1608, %v1612
        %v1615 = vshrl.u32 %v1463, 16
        %v1617 = vshll.u32 %v1463, 16
        %v1619 = vrot.slane %v1617, 1
        %v1620 = vor.u32 %v1615, %v1619
        %v1622 = vshll.u32 %v1543, 16
        %v1624 = vrot.slane %v1622, 1
        %v1625 = vsel %vm1040, %v1620, %v1624
        %v1627 = vshrl.u32 %v1464, 16
        %v1629 = vshll.u32 %v1464, 16
        %v1631 = vrot.slane %v1629, 1
        %v1632 = vor.u32 %v1627, %v1631
        %v1634 = vshll.u32 %v1544, 16
        %v1636 = vrot.slane %v1634, 1
        %v1637 = vsel %vm1040, %v1632, %v1636
        %v1639 = vshrl.u32 %v1465, 16
        %v1641 = vshll.u32 %v1465, 16
        %v1643 = vrot.slane %v1641, 1
        %v1644 = vor.u32 %v1639, %v1643
        %v1646 = vshll.u32 %v1545, 16
        %v1648 = vrot.slane %v1646, 1
        %v1649 = vsel %vm1040, %v1644, %v1648
        %v1651 = vshrl.u32 %v1466, 16
        %v1653 = vshll.u32 %v1466, 16
        %v1655 = vrot.slane %v1653, 1
        %v1656 = vor.u32 %v1651, %v1655
        %v1658 = vshll.u32 %v1546, 16
        %v1660 = vrot.slane %v1658, 1
        %v1661 = vsel %vm1040, %v1656, %v1660
        %v1663 = vshrl.u32 %v1467, 16
        %v1665 = vshll.u32 %v1467, 16
        %v1667 = vrot.slane %v1665, 1
        %v1668 = vor.u32 %v1663, %v1667
        %v1670 = vshll.u32 %v1547, 16
        %v1672 = vrot.slane %v1670, 1
        %v1673 = vsel %vm1040, %v1668, %v1672
        %v1675 = vshrl.u32 %v1468, 16
        %v1677 = vshll.u32 %v1468, 16
        %v1679 = vrot.slane %v1677, 1
        %v1680 = vor.u32 %v1675, %v1679
        %v1682 = vshll.u32 %v1548, 16
        %v1684 = vrot.slane %v1682, 1
        %v1685 = vsel %vm1040, %v1680, %v1684
        %v1687 = vshrl.u32 %v1469, 16
        %v1689 = vshll.u32 %v1469, 16
        %v1691 = vrot.slane %v1689, 1
        %v1692 = vor.u32 %v1687, %v1691
        %v1694 = vshll.u32 %v1549, 16
        %v1696 = vrot.slane %v1694, 1
        %v1697 = vsel %vm1040, %v1692, %v1696
        %v1699 = vshrl.u32 %v1470, 16
        %v1701 = vshll.u32 %v1470, 16
        %v1703 = vrot.slane %v1701, 1
        %v1704 = vor.u32 %v1699, %v1703
        %v1706 = vshll.u32 %v1550, 16
        %v1708 = vrot.slane %v1706, 1
        %v1709 = vsel %vm1040, %v1704, %v1708
        %v1711 = vshrl.u32 %v1471, 16
        %v1713 = vshll.u32 %v1471, 16
        %v1715 = vrot.slane %v1713, 1
        %v1716 = vor.u32 %v1711, %v1715
        %v1718 = vshll.u32 %v1551, 16
        %v1720 = vrot.slane %v1718, 1
        %v1721 = vsel %vm1040, %v1716, %v1720
        %v1723 = vshrl.u32 %v1472, 16
        %v1725 = vshll.u32 %v1472, 16
        %v1727 = vrot.slane %v1725, 1
        %v1728 = vor.u32 %v1723, %v1727
        %v1730 = vshll.u32 %v1552, 16
        %v1732 = vrot.slane %v1730, 1
        %v1733 = vsel %vm1040, %v1728, %v1732
        %v1735 = vshrl.u32 %v1473, 16
        %v1737 = vshll.u32 %v1473, 16
        %v1739 = vrot.slane %v1737, 1
        %v1740 = vor.u32 %v1735, %v1739
        %v1742 = vshll.u32 %v1553, 16
        %v1744 = vrot.slane %v1742, 1
        %v1745 = vsel %vm1040, %v1740, %v1744
        %1746 = vrot.lane.b32.xlu0 %v1565, 64
        %v1747 = vpop.permute.xlu0 %1746
        %1748 = vrot.lane.b32.xlu0 %v1577, 64
        %v1749 = vpop.permute.xlu0 %1748
        %1750 = vrot.lane.b32.xlu0 %v1589, 64
        %v1751 = vpop.permute.xlu0 %1750
        %1752 = vrot.lane.b32.xlu0 %v1601, 64
        %v1753 = vpop.permute.xlu0 %1752
        %1754 = vrot.lane.b32.xlu0 %v1613, 64
        %v1755 = vpop.permute.xlu0 %1754
        %1756 = vrot.lane.b32.xlu0 %v1625, 64
        %v1757 = vpop.permute.xlu0 %1756
        %1758 = vrot.lane.b32.xlu0 %v1637, 64
        %v1759 = vpop.permute.xlu0 %1758
        %1760 = vrot.lane.b32.xlu0 %v1649, 64
        %v1761 = vpop.permute.xlu0 %1760
        %1762 = vrot.lane.b32.xlu0 %v1661, 64
        %v1763 = vpop.permute.xlu0 %1762
        %1764 = vrot.lane.b32.xlu0 %v1673, 64
        %v1765 = vpop.permute.xlu0 %1764
        %1766 = vrot.lane.b32.xlu0 %v1685, 64
        %v1767 = vpop.permute.xlu0 %1766
        %1768 = vrot.lane.b32.xlu0 %v1697, 64
        %v1769 = vpop.permute.xlu0 %1768
        %1770 = vrot.lane.b32.xlu0 %v1709, 64
        %v1771 = vpop.permute.xlu0 %1770
        %1772 = vrot.lane.b32.xlu0 %v1721, 64
        %v1773 = vpop.permute.xlu0 %1772
        %1774 = vrot.lane.b32.xlu0 %v1733, 64
        %v1775 = vpop.permute.xlu0 %1774
        %1776 = vrot.lane.b32.xlu0 %v1745, 64
        %v1777 = vpop.permute.xlu0 %1776
        %v1794 = vunpack.c.l.b16 %v831
        %v1795 = vunpack.c.l.b16 %v832
        %v1796 = vunpack.c.l.b16 %v833
        %v1797 = vunpack.c.l.b16 %v834
        %v1798 = vunpack.c.l.b16 %v835
        %v1799 = vunpack.c.l.b16 %v836
        %v1800 = vunpack.c.l.b16 %v837
        %v1801 = vunpack.c.l.b16 %v838
        %v1802 = vunpack.c.l.b16 %v839
        %v1803 = vunpack.c.l.b16 %v840
        %v1804 = vunpack.c.l.b16 %v841
        %v1805 = vunpack.c.l.b16 %v842
        %v1806 = vunpack.c.l.b16 %v843
        %v1807 = vunpack.c.l.b16 %v844
        %v1808 = vunpack.c.l.b16 %v845
        %v1809 = vunpack.c.l.b16 %v846
        %v1810 = vpack.c.b16 %v1427, %v1794
        %v1811 = vpack.c.b16 %v1429, %v1795
        %v1812 = vpack.c.b16 %v1431, %v1796
        %v1813 = vpack.c.b16 %v1433, %v1797
        %v1814 = vpack.c.b16 %v1435, %v1798
        %v1815 = vpack.c.b16 %v1437, %v1799
        %v1816 = vpack.c.b16 %v1439, %v1800
        %v1817 = vpack.c.b16 %v1441, %v1801
        %v1818 = vpack.c.b16 %v1443, %v1802
        %v1819 = vpack.c.b16 %v1445, %v1803
        %v1820 = vpack.c.b16 %v1447, %v1804
        %v1821 = vpack.c.b16 %v1449, %v1805
        %v1822 = vpack.c.b16 %v1451, %v1806
        %v1823 = vpack.c.b16 %v1453, %v1807
        %v1824 = vpack.c.b16 %v1455, %v1808
        %v1825 = vpack.c.b16 %v1457, %v1809
        %v1826 = vrot.slane %v1810, 1
        %v1827 = vrot.slane %v1538, 1
        %v1828 = vsel %vm1313, %v1826, %v1827
        %v1829 = vrot.slane %v1811, 1
        %v1830 = vrot.slane %v1539, 1
        %v1831 = vsel %vm1313, %v1829, %v1830
        %v1832 = vrot.slane %v1812, 1
        %v1833 = vrot.slane %v1540, 1
        %v1834 = vsel %vm1313, %v1832, %v1833
        %v1835 = vrot.slane %v1813, 1
        %v1836 = vrot.slane %v1541, 1
        %v1837 = vsel %vm1313, %v1835, %v1836
        %v1838 = vrot.slane %v1814, 1
        %v1839 = vrot.slane %v1542, 1
        %v1840 = vsel %vm1313, %v1838, %v1839
        %v1841 = vrot.slane %v1815, 1
        %v1842 = vrot.slane %v1543, 1
        %v1843 = vsel %vm1313, %v1841, %v1842
        %v1844 = vrot.slane %v1816, 1
        %v1845 = vrot.slane %v1544, 1
        %v1846 = vsel %vm1313, %v1844, %v1845
        %v1847 = vrot.slane %v1817, 1
        %v1848 = vrot.slane %v1545, 1
        %v1849 = vsel %vm1313, %v1847, %v1848
        %v1850 = vrot.slane %v1818, 1
        %v1851 = vrot.slane %v1546, 1
        %v1852 = vsel %vm1313, %v1850, %v1851
        %v1853 = vrot.slane %v1819, 1
        %v1854 = vrot.slane %v1547, 1
        %v1855 = vsel %vm1313, %v1853, %v1854
        %v1856 = vrot.slane %v1820, 1
        %v1857 = vrot.slane %v1548, 1
        %v1858 = vsel %vm1313, %v1856, %v1857
        %v1859 = vrot.slane %v1821, 1
        %v1860 = vrot.slane %v1549, 1
        %v1861 = vsel %vm1313, %v1859, %v1860
        %v1862 = vrot.slane %v1822, 1
        %v1863 = vrot.slane %v1550, 1
        %v1864 = vsel %vm1313, %v1862, %v1863
        %v1865 = vrot.slane %v1823, 1
        %v1866 = vrot.slane %v1551, 1
        %v1867 = vsel %vm1313, %v1865, %v1866
        %v1868 = vrot.slane %v1824, 1
        %v1869 = vrot.slane %v1552, 1
        %v1870 = vsel %vm1313, %v1868, %v1869
        %v1871 = vrot.slane %v1825, 1
        %v1872 = vrot.slane %v1553, 1
        %v1873 = vsel %vm1313, %v1871, %v1872
        %1874 = vrot.lane.b32.xlu0 %v1828, 80
        %v1875 = vpop.permute.xlu0 %1874
        %1876 = vrot.lane.b32.xlu0 %v1831, 80
        %v1877 = vpop.permute.xlu0 %1876
        %1878 = vrot.lane.b32.xlu0 %v1834, 80
        %v1879 = vpop.permute.xlu0 %1878
        %1880 = vrot.lane.b32.xlu0 %v1837, 80
        %v1881 = vpop.permute.xlu0 %1880
        %1882 = vrot.lane.b32.xlu0 %v1840, 80
        %v1883 = vpop.permute.xlu0 %1882
        %1884 = vrot.lane.b32.xlu0 %v1843, 80
        %v1885 = vpop.permute.xlu0 %1884
        %1886 = vrot.lane.b32.xlu0 %v1846, 80
        %v1887 = vpop.permute.xlu0 %1886
        %1888 = vrot.lane.b32.xlu0 %v1849, 80
        %v1889 = vpop.permute.xlu0 %1888
        %1890 = vrot.lane.b32.xlu0 %v1852, 80
        %v1891 = vpop.permute.xlu0 %1890
        %1892 = vrot.lane.b32.xlu0 %v1855, 80
        %v1893 = vpop.permute.xlu0 %1892
        %1894 = vrot.lane.b32.xlu0 %v1858, 80
        %v1895 = vpop.permute.xlu0 %1894
        %1896 = vrot.lane.b32.xlu0 %v1861, 80
        %v1897 = vpop.permute.xlu0 %1896
        %1898 = vrot.lane.b32.xlu0 %v1864, 80
        %v1899 = vpop.permute.xlu0 %1898
        %1900 = vrot.lane.b32.xlu0 %v1867, 80
        %v1901 = vpop.permute.xlu0 %1900
        %1902 = vrot.lane.b32.xlu0 %v1870, 80
        %v1903 = vpop.permute.xlu0 %1902
        %1904 = vrot.lane.b32.xlu0 %v1873, 80
        %v1905 = vpop.permute.xlu0 %1904
        %v1938 = vunpack.c.l.b16 %v848
        %v1939 = vunpack.c.l.b16 %v849
        %v1940 = vunpack.c.l.b16 %v850
        %v1941 = vunpack.c.l.b16 %v851
        %v1942 = vunpack.c.l.b16 %v852
        %v1943 = vunpack.c.l.b16 %v853
        %v1944 = vunpack.c.l.b16 %v854
        %v1945 = vunpack.c.l.b16 %v855
        %v1946 = vunpack.c.l.b16 %v856
        %v1947 = vunpack.c.l.b16 %v857
        %v1948 = vunpack.c.l.b16 %v858
        %v1949 = vunpack.c.l.b16 %v859
        %v1950 = vunpack.c.l.b16 %v860
        %v1951 = vunpack.c.l.b16 %v861
        %v1952 = vunpack.c.l.b16 %v862
        %v1953 = vunpack.c.l.b16 %v863
        %v1954 = vunpack.c.l.b16 %v864
        %v1955 = vunpack.c.l.b16 %v865
        %v1956 = vunpack.c.l.b16 %v866
        %v1957 = vunpack.c.l.b16 %v867
        %v1958 = vunpack.c.l.b16 %v868
        %v1959 = vunpack.c.l.b16 %v869
        %v1960 = vunpack.c.l.b16 %v870
        %v1961 = vunpack.c.l.b16 %v871
        %v1962 = vunpack.c.l.b16 %v872
        %v1963 = vunpack.c.l.b16 %v873
        %v1964 = vunpack.c.l.b16 %v874
        %v1965 = vunpack.c.l.b16 %v875
        %v1966 = vunpack.c.l.b16 %v876
        %v1967 = vunpack.c.l.b16 %v877
        %v1968 = vunpack.c.l.b16 %v878
        %v1969 = vunpack.c.l.b16 %v879
        %v1970 = vpack.c.b16 %v1939, %v1938
        %v1971 = vpack.c.b16 %v1941, %v1940
        %v1972 = vpack.c.b16 %v1943, %v1942
        %v1973 = vpack.c.b16 %v1945, %v1944
        %v1974 = vpack.c.b16 %v1947, %v1946
        %v1975 = vpack.c.b16 %v1949, %v1948
        %v1976 = vpack.c.b16 %v1951, %v1950
        %v1977 = vpack.c.b16 %v1953, %v1952
        %v1978 = vpack.c.b16 %v1955, %v1954
        %v1979 = vpack.c.b16 %v1957, %v1956
        %v1980 = vpack.c.b16 %v1959, %v1958
        %v1981 = vpack.c.b16 %v1961, %v1960
        %v1982 = vpack.c.b16 %v1963, %v1962
        %v1983 = vpack.c.b16 %v1965, %v1964
        %v1984 = vpack.c.b16 %v1967, %v1966
        %v1985 = vpack.c.b16 %v1969, %v1968
        %1986 = vrot.lane.b32.xlu0 %v1970, 96
        %v1987 = vpop.permute.xlu0 %1986
        %1988 = vrot.lane.b32.xlu0 %v1971, 96
        %v1989 = vpop.permute.xlu0 %1988
        %1990 = vrot.lane.b32.xlu0 %v1972, 96
        %v1991 = vpop.permute.xlu0 %1990
        %1992 = vrot.lane.b32.xlu0 %v1973, 96
        %v1993 = vpop.permute.xlu0 %1992
        %1994 = vrot.lane.b32.xlu0 %v1974, 96
        %v1995 = vpop.permute.xlu0 %1994
        %1996 = vrot.lane.b32.xlu0 %v1975, 96
        %v1997 = vpop.permute.xlu0 %1996
        %1998 = vrot.lane.b32.xlu0 %v1976, 96
        %v1999 = vpop.permute.xlu0 %1998
        %2000 = vrot.lane.b32.xlu0 %v1977, 96
        %v2001 = vpop.permute.xlu0 %2000
        %2002 = vrot.lane.b32.xlu0 %v1978, 96
        %v2003 = vpop.permute.xlu0 %2002
        %2004 = vrot.lane.b32.xlu0 %v1979, 96
        %v2005 = vpop.permute.xlu0 %2004
        %2006 = vrot.lane.b32.xlu0 %v1980, 96
        %v2007 = vpop.permute.xlu0 %2006
        %2008 = vrot.lane.b32.xlu0 %v1981, 96
        %v2009 = vpop.permute.xlu0 %2008
        %2010 = vrot.lane.b32.xlu0 %v1982, 96
        %v2011 = vpop.permute.xlu0 %2010
        %2012 = vrot.lane.b32.xlu0 %v1983, 96
        %v2013 = vpop.permute.xlu0 %2012
        %2014 = vrot.lane.b32.xlu0 %v1984, 96
        %v2015 = vpop.permute.xlu0 %2014
        %2016 = vrot.lane.b32.xlu0 %v1985, 96
        %v2017 = vpop.permute.xlu0 %2016
        %v2034 = vunpack.c.l.b16 %v880
        %v2035 = vunpack.c.l.b16 %v881
        %v2036 = vunpack.c.l.b16 %v882
        %v2037 = vunpack.c.l.b16 %v883
        %v2038 = vunpack.c.l.b16 %v884
        %v2039 = vunpack.c.l.b16 %v885
        %v2040 = vunpack.c.l.b16 %v886
        %v2041 = vunpack.c.l.b16 %v887
        %v2042 = vunpack.c.l.b16 %v888
        %v2043 = vunpack.c.l.b16 %v889
        %v2044 = vunpack.c.l.b16 %v890
        %v2045 = vunpack.c.l.b16 %v891
        %v2046 = vunpack.c.l.b16 %v892
        %v2047 = vunpack.c.l.b16 %v893
        %v2048 = vunpack.c.l.b16 %v894
        %v2049 = vunpack.c.l.b16 %v895
        %v2050 = vpack.c.b16 %v2034, %v2034
        %v2051 = vpack.c.b16 %v2035, %v2035
        %v2052 = vpack.c.b16 %v2036, %v2036
        %v2053 = vpack.c.b16 %v2037, %v2037
        %v2054 = vpack.c.b16 %v2038, %v2038
        %v2055 = vpack.c.b16 %v2039, %v2039
        %v2056 = vpack.c.b16 %v2040, %v2040
        %v2057 = vpack.c.b16 %v2041, %v2041
        %v2058 = vpack.c.b16 %v2042, %v2042
        %v2059 = vpack.c.b16 %v2043, %v2043
        %v2060 = vpack.c.b16 %v2044, %v2044
        %v2061 = vpack.c.b16 %v2045, %v2045
        %v2062 = vpack.c.b16 %v2046, %v2046
        %v2063 = vpack.c.b16 %v2047, %v2047
        %v2064 = vpack.c.b16 %v2048, %v2048
        %v2065 = vpack.c.b16 %v2049, %v2049
        %v2067 = vshrl.u32 %v1970, 16
        %v2069 = vshll.u32 %v1970, 16
        %v2071 = vrot.slane %v2069, 1
        %v2072 = vor.u32 %v2067, %v2071
        %v2074 = vshll.u32 %v2050, 16
        %v2076 = vrot.slane %v2074, 1
        %v2077 = vsel %vm1040, %v2072, %v2076
        %v2079 = vshrl.u32 %v1971, 16
        %v2081 = vshll.u32 %v1971, 16
        %v2083 = vrot.slane %v2081, 1
        %v2084 = vor.u32 %v2079, %v2083
        %v2086 = vshll.u32 %v2051, 16
        %v2088 = vrot.slane %v2086, 1
        %v2089 = vsel %vm1040, %v2084, %v2088
        %v2091 = vshrl.u32 %v1972, 16
        %v2093 = vshll.u32 %v1972, 16
        %v2095 = vrot.slane %v2093, 1
        %v2096 = vor.u32 %v2091, %v2095
        %v2098 = vshll.u32 %v2052, 16
        %v2100 = vrot.slane %v2098, 1
        %v2101 = vsel %vm1040, %v2096, %v2100
        %v2103 = vshrl.u32 %v1973, 16
        %v2105 = vshll.u32 %v1973, 16
        %v2107 = vrot.slane %v2105, 1
        %v2108 = vor.u32 %v2103, %v2107
        %v2110 = vshll.u32 %v2053, 16
        %v2112 = vrot.slane %v2110, 1
        %v2113 = vsel %vm1040, %v2108, %v2112
        %v2115 = vshrl.u32 %v1974, 16
        %v2117 = vshll.u32 %v1974, 16
        %v2119 = vrot.slane %v2117, 1
        %v2120 = vor.u32 %v2115, %v2119
        %v2122 = vshll.u32 %v2054, 16
        %v2124 = vrot.slane %v2122, 1
        %v2125 = vsel %vm1040, %v2120, %v2124
        %v2127 = vshrl.u32 %v1975, 16
        %v2129 = vshll.u32 %v1975, 16
        %v2131 = vrot.slane %v2129, 1
        %v2132 = vor.u32 %v2127, %v2131
        %v2134 = vshll.u32 %v2055, 16
        %v2136 = vrot.slane %v2134, 1
        %v2137 = vsel %vm1040, %v2132, %v2136
        %v2139 = vshrl.u32 %v1976, 16
        %v2141 = vshll.u32 %v1976, 16
        %v2143 = vrot.slane %v2141, 1
        %v2144 = vor.u32 %v2139, %v2143
        %v2146 = vshll.u32 %v2056, 16
        %v2148 = vrot.slane %v2146, 1
        %v2149 = vsel %vm1040, %v2144, %v2148
        %v2151 = vshrl.u32 %v1977, 16
        %v2153 = vshll.u32 %v1977, 16
        %v2155 = vrot.slane %v2153, 1
        %v2156 = vor.u32 %v2151, %v2155
        %v2158 = vshll.u32 %v2057, 16
        %v2160 = vrot.slane %v2158, 1
        %v2161 = vsel %vm1040, %v2156, %v2160
        %v2163 = vshrl.u32 %v1978, 16
        %v2165 = vshll.u32 %v1978, 16
        %v2167 = vrot.slane %v2165, 1
        %v2168 = vor.u32 %v2163, %v2167
        %v2170 = vshll.u32 %v2058, 16
        %v2172 = vrot.slane %v2170, 1
        %v2173 = vsel %vm1040, %v2168, %v2172
        %v2175 = vshrl.u32 %v1979, 16
        %v2177 = vshll.u32 %v1979, 16
        %v2179 = vrot.slane %v2177, 1
        %v2180 = vor.u32 %v2175, %v2179
        %v2182 = vshll.u32 %v2059, 16
        %v2184 = vrot.slane %v2182, 1
        %v2185 = vsel %vm1040, %v2180, %v2184
        %v2187 = vshrl.u32 %v1980, 16
        %v2189 = vshll.u32 %v1980, 16
        %v2191 = vrot.slane %v2189, 1
        %v2192 = vor.u32 %v2187, %v2191
        %v2194 = vshll.u32 %v2060, 16
        %v2196 = vrot.slane %v2194, 1
        %v2197 = vsel %vm1040, %v2192, %v2196
        %v2199 = vshrl.u32 %v1981, 16
        %v2201 = vshll.u32 %v1981, 16
        %v2203 = vrot.slane %v2201, 1
        %v2204 = vor.u32 %v2199, %v2203
        %v2206 = vshll.u32 %v2061, 16
        %v2208 = vrot.slane %v2206, 1
        %v2209 = vsel %vm1040, %v2204, %v2208
        %v2211 = vshrl.u32 %v1982, 16
        %v2213 = vshll.u32 %v1982, 16
        %v2215 = vrot.slane %v2213, 1
        %v2216 = vor.u32 %v2211, %v2215
        %v2218 = vshll.u32 %v2062, 16
        %v2220 = vrot.slane %v2218, 1
        %v2221 = vsel %vm1040, %v2216, %v2220
        %v2223 = vshrl.u32 %v1983, 16
        %v2225 = vshll.u32 %v1983, 16
        %v2227 = vrot.slane %v2225, 1
        %v2228 = vor.u32 %v2223, %v2227
        %v2230 = vshll.u32 %v2063, 16
        %v2232 = vrot.slane %v2230, 1
        %v2233 = vsel %vm1040, %v2228, %v2232
        %v2235 = vshrl.u32 %v1984, 16
        %v2237 = vshll.u32 %v1984, 16
        %v2239 = vrot.slane %v2237, 1
        %v2240 = vor.u32 %v2235, %v2239
        %v2242 = vshll.u32 %v2064, 16
        %v2244 = vrot.slane %v2242, 1
        %v2245 = vsel %vm1040, %v2240, %v2244
        %v2247 = vshrl.u32 %v1985, 16
        %v2249 = vshll.u32 %v1985, 16
        %v2251 = vrot.slane %v2249, 1
        %v2252 = vor.u32 %v2247, %v2251
        %v2254 = vshll.u32 %v2065, 16
        %v2256 = vrot.slane %v2254, 1
        %v2257 = vsel %vm1040, %v2252, %v2256
        %2258 = vrot.lane.b32.xlu0 %v2077, 112
        %v2259 = vpop.permute.xlu0 %2258
        %2260 = vrot.lane.b32.xlu0 %v2089, 112
        %v2261 = vpop.permute.xlu0 %2260
        %2262 = vrot.lane.b32.xlu0 %v2101, 112
        %v2263 = vpop.permute.xlu0 %2262
        %2264 = vrot.lane.b32.xlu0 %v2113, 112
        %v2265 = vpop.permute.xlu0 %2264
        %2266 = vrot.lane.b32.xlu0 %v2125, 112
        %v2267 = vpop.permute.xlu0 %2266
        %2268 = vrot.lane.b32.xlu0 %v2137, 112
        %v2269 = vpop.permute.xlu0 %2268
        %2270 = vrot.lane.b32.xlu0 %v2149, 112
        %v2271 = vpop.permute.xlu0 %2270
        %2272 = vrot.lane.b32.xlu0 %v2161, 112
        %v2273 = vpop.permute.xlu0 %2272
        %2274 = vrot.lane.b32.xlu0 %v2173, 112
        %v2275 = vpop.permute.xlu0 %2274
        %2276 = vrot.lane.b32.xlu0 %v2185, 112
        %v2277 = vpop.permute.xlu0 %2276
        %2278 = vrot.lane.b32.xlu0 %v2197, 112
        %v2279 = vpop.permute.xlu0 %2278
        %2280 = vrot.lane.b32.xlu0 %v2209, 112
        %v2281 = vpop.permute.xlu0 %2280
        %2282 = vrot.lane.b32.xlu0 %v2221, 112
        %v2283 = vpop.permute.xlu0 %2282
        %2284 = vrot.lane.b32.xlu0 %v2233, 112
        %v2285 = vpop.permute.xlu0 %2284
        %2286 = vrot.lane.b32.xlu0 %v2245, 112
        %v2287 = vpop.permute.xlu0 %2286
        %2288 = vrot.lane.b32.xlu0 %v2257, 112
        %v2289 = vpop.permute.xlu0 %2288
        %v2306 = vunpack.c.l.b16 %v896
        %v2307 = vunpack.c.l.b16 %v897
        %v2308 = vunpack.c.l.b16 %v898
        %v2309 = vunpack.c.l.b16 %v899
        %v2310 = vunpack.c.l.b16 %v900
        %v2311 = vunpack.c.l.b16 %v901
        %v2312 = vunpack.c.l.b16 %v902
        %v2313 = vunpack.c.l.b16 %v903
        %v2314 = vunpack.c.l.b16 %v904
        %v2315 = vunpack.c.l.b16 %v905
        %v2316 = vunpack.c.l.b16 %v906
        %v2317 = vunpack.c.l.b16 %v907
        %v2318 = vunpack.c.l.b16 %v908
        %v2319 = vunpack.c.l.b16 %v909
        %v2320 = vunpack.c.l.b16 %v910
        %v2321 = vunpack.c.l.b16 %v911
        %v2322 = vpack.c.b16 %v1939, %v2306
        %v2323 = vpack.c.b16 %v1941, %v2307
        %v2324 = vpack.c.b16 %v1943, %v2308
        %v2325 = vpack.c.b16 %v1945, %v2309
        %v2326 = vpack.c.b16 %v1947, %v2310
        %v2327 = vpack.c.b16 %v1949, %v2311
        %v2328 = vpack.c.b16 %v1951, %v2312
        %v2329 = vpack.c.b16 %v1953, %v2313
        %v2330 = vpack.c.b16 %v1955, %v2314
        %v2331 = vpack.c.b16 %v1957, %v2315
        %v2332 = vpack.c.b16 %v1959, %v2316
        %v2333 = vpack.c.b16 %v1961, %v2317
        %v2334 = vpack.c.b16 %v1963, %v2318
        %v2335 = vpack.c.b16 %v1965, %v2319
        %v2336 = vpack.c.b16 %v1967, %v2320
        %v2337 = vpack.c.b16 %v1969, %v2321
        %v2338 = vrot.slane %v2322, 1
        %v2339 = vrot.slane %v2050, 1
        %v2340 = vsel %vm1313, %v2338, %v2339
        %v2341 = vrot.slane %v2323, 1
        %v2342 = vrot.slane %v2051, 1
        %v2343 = vsel %vm1313, %v2341, %v2342
        %v2344 = vrot.slane %v2324, 1
        %v2345 = vrot.slane %v2052, 1
        %v2346 = vsel %vm1313, %v2344, %v2345
        %v2347 = vrot.slane %v2325, 1
        %v2348 = vrot.slane %v2053, 1
        %v2349 = vsel %vm1313, %v2347, %v2348
        %v2350 = vrot.slane %v2326, 1
        %v2351 = vrot.slane %v2054, 1
        %v2352 = vsel %vm1313, %v2350, %v2351
        %v2353 = vrot.slane %v2327, 1
        %v2354 = vrot.slane %v2055, 1
        %v2355 = vsel %vm1313, %v2353, %v2354
        %v2356 = vrot.slane %v2328, 1
        %v2357 = vrot.slane %v2056, 1
        %v2358 = vsel %vm1313, %v2356, %v2357
        %v2359 = vrot.slane %v2329, 1
        %v2360 = vrot.slane %v2057, 1
        %v2361 = vsel %vm1313, %v2359, %v2360
        %v2362 = vrot.slane %v2330, 1
        %v2363 = vrot.slane %v2058, 1
        %v2364 = vsel %vm1313, %v2362, %v2363
        %v2365 = vrot.slane %v2331, 1
        %v2366 = vrot.slane %v2059, 1
        %v2367 = vsel %vm1313, %v2365, %v2366
        %v2368 = vrot.slane %v2332, 1
        %v2369 = vrot.slane %v2060, 1
        %v2370 = vsel %vm1313, %v2368, %v2369
        %v2371 = vrot.slane %v2333, 1
        %v2372 = vrot.slane %v2061, 1
        %v2373 = vsel %vm1313, %v2371, %v2372
        %v2374 = vrot.slane %v2334, 1
        %v2375 = vrot.slane %v2062, 1
        %v2376 = vsel %vm1313, %v2374, %v2375
        %v2377 = vrot.slane %v2335, 1
        %v2378 = vrot.slane %v2063, 1
        %v2379 = vsel %vm1313, %v2377, %v2378
        %v2380 = vrot.slane %v2336, 1
        %v2381 = vrot.slane %v2064, 1
        %v2382 = vsel %vm1313, %v2380, %v2381
        %v2383 = vrot.slane %v2337, 1
        %v2384 = vrot.slane %v2065, 1
        %v2385 = vsel %vm1313, %v2383, %v2384
        %vm2386 = vcmask 130048
        %v2388 = vsel %vm2386, %v976, %v1234
        %v2390 = vsel %vm2386, %v977, %v1236
        %v2392 = vsel %vm2386, %v978, %v1238
        %v2394 = vsel %vm2386, %v979, %v1240
        %v2396 = vsel %vm2386, %v980, %v1242
        %v2398 = vsel %vm2386, %v981, %v1244
        %v2400 = vsel %vm2386, %v982, %v1246
        %v2402 = vsel %vm2386, %v983, %v1248
        %v2404 = vsel %vm2386, %v984, %v1250
        %v2406 = vsel %vm2386, %v985, %v1252
        %v2408 = vsel %vm2386, %v986, %v1254
        %v2410 = vsel %vm2386, %v987, %v1256
        %v2412 = vsel %vm2386, %v988, %v1258
        %v2414 = vsel %vm2386, %v989, %v1260
        %v2416 = vsel %vm2386, %v990, %v1262
        %v2418 = vsel %vm2386, %v991, %v1264
        %vm2419 = vcmask 261120
        %v2421 = vsel %vm2419, %v2388, %v1363
        %v2423 = vsel %vm2419, %v2390, %v1365
        %v2425 = vsel %vm2419, %v2392, %v1367
        %v2427 = vsel %vm2419, %v2394, %v1369
        %v2429 = vsel %vm2419, %v2396, %v1371
        %v2431 = vsel %vm2419, %v2398, %v1373
        %v2433 = vsel %vm2419, %v2400, %v1375
        %v2435 = vsel %vm2419, %v2402, %v1377
        %v2437 = vsel %vm2419, %v2404, %v1379
        %v2439 = vsel %vm2419, %v2406, %v1381
        %v2441 = vsel %vm2419, %v2408, %v1383
        %v2443 = vsel %vm2419, %v2410, %v1385
        %v2445 = vsel %vm2419, %v2412, %v1387
        %v2447 = vsel %vm2419, %v2414, %v1389
        %v2449 = vsel %vm2419, %v2416, %v1391
        %v2451 = vsel %vm2419, %v2418, %v1393
        %vm2452 = vcmask 392192
        %v2454 = vsel %vm2452, %v2421, %v1475
        %v2456 = vsel %vm2452, %v2423, %v1477
        %v2458 = vsel %vm2452, %v2425, %v1479
        %v2460 = vsel %vm2452, %v2427, %v1481
        %v2462 = vsel %vm2452, %v2429, %v1483
        %v2464 = vsel %vm2452, %v2431, %v1485
        %v2466 = vsel %vm2452, %v2433, %v1487
        %v2468 = vsel %vm2452, %v2435, %v1489
        %v2470 = vsel %vm2452, %v2437, %v1491
        %v2472 = vsel %vm2452, %v2439, %v1493
        %v2474 = vsel %vm2452, %v2441, %v1495
        %v2476 = vsel %vm2452, %v2443, %v1497
        %v2478 = vsel %vm2452, %v2445, %v1499
        %v2480 = vsel %vm2452, %v2447, %v1501
        %v2482 = vsel %vm2452, %v2449, %v1503
        %v2484 = vsel %vm2452, %v2451, %v1505
        %vm2485 = vcmask 523264
        %v2487 = vsel %vm2485, %v2454, %v1747
        %v2489 = vsel %vm2485, %v2456, %v1749
        %v2491 = vsel %vm2485, %v2458, %v1751
        %v2493 = vsel %vm2485, %v2460, %v1753
        %v2495 = vsel %vm2485, %v2462, %v1755
        %v2497 = vsel %vm2485, %v2464, %v1757
        %v2499 = vsel %vm2485, %v2466, %v1759
        %v2501 = vsel %vm2485, %v2468, %v1761
        %v2503 = vsel %vm2485, %v2470, %v1763
        %v2505 = vsel %vm2485, %v2472, %v1765
        %v2507 = vsel %vm2485, %v2474, %v1767
        %v2509 = vsel %vm2485, %v2476, %v1769
        %v2511 = vsel %vm2485, %v2478, %v1771
        %v2513 = vsel %vm2485, %v2480, %v1773
        %v2515 = vsel %vm2485, %v2482, %v1775
        %v2517 = vsel %vm2485, %v2484, %v1777
        %vm2518 = vcmask 654336
        %v2520 = vsel %vm2518, %v2487, %v1875
        %v2522 = vsel %vm2518, %v2489, %v1877
        %v2524 = vsel %vm2518, %v2491, %v1879
        %v2526 = vsel %vm2518, %v2493, %v1881
        %v2528 = vsel %vm2518, %v2495, %v1883
        %v2530 = vsel %vm2518, %v2497, %v1885
        %v2532 = vsel %vm2518, %v2499, %v1887
        %v2534 = vsel %vm2518, %v2501, %v1889
        %v2536 = vsel %vm2518, %v2503, %v1891
        %v2538 = vsel %vm2518, %v2505, %v1893
        %v2540 = vsel %vm2518, %v2507, %v1895
        %v2542 = vsel %vm2518, %v2509, %v1897
        %v2544 = vsel %vm2518, %v2511, %v1899
        %v2546 = vsel %vm2518, %v2513, %v1901
        %v2548 = vsel %vm2518, %v2515, %v1903
        %v2550 = vsel %vm2518, %v2517, %v1905
        %vm2551 = vcmask 785408
        %v2553 = vsel %vm2551, %v2520, %v1987
        %v2555 = vsel %vm2551, %v2522, %v1989
        %v2557 = vsel %vm2551, %v2524, %v1991
        %v2559 = vsel %vm2551, %v2526, %v1993
        %v2561 = vsel %vm2551, %v2528, %v1995
        %v2563 = vsel %vm2551, %v2530, %v1997
        %v2565 = vsel %vm2551, %v2532, %v1999
        %v2567 = vsel %vm2551, %v2534, %v2001
        %v2569 = vsel %vm2551, %v2536, %v2003
        %v2571 = vsel %vm2551, %v2538, %v2005
        %v2573 = vsel %vm2551, %v2540, %v2007
        %v2575 = vsel %vm2551, %v2542, %v2009
        %v2577 = vsel %vm2551, %v2544, %v2011
        %v2579 = vsel %vm2551, %v2546, %v2013
        %v2581 = vsel %vm2551, %v2548, %v2015
        %v2583 = vsel %vm2551, %v2550, %v2017
        %vm2584 = vcmask 916480
        %v2586 = vsel %vm2584, %v2553, %v2259
        %v2589 = vsel %vm2584, %v2555, %v2261
        %v2592 = vsel %vm2584, %v2557, %v2263
        %v2595 = vsel %vm2584, %v2559, %v2265
        %v2598 = vsel %vm2584, %v2561, %v2267
        %v2601 = vsel %vm2584, %v2563, %v2269
        %v2604 = vsel %vm2584, %v2565, %v2271
        %v2607 = vsel %vm2584, %v2567, %v2273
        %v2610 = vsel %vm2584, %v2569, %v2275
        %v2613 = vsel %vm2584, %v2571, %v2277
        %v2616 = vsel %vm2584, %v2573, %v2279
        %v2619 = vsel %vm2584, %v2575, %v2281
        %v2622 = vsel %vm2584, %v2577, %v2283
        %v2625 = vsel %vm2584, %v2579, %v2285
        %v2628 = vsel %vm2584, %v2581, %v2287
        %v2631 = vsel %vm2584, %v2583, %v2289
        %v2633 = vld [vmem:[%s1] sm:$0xf]
        %v2634 = vld [vmem:[%s1 + $0x4] sm:$0xf]
        %v2635 = vld [vmem:[%s1 + $0x8] sm:$0xf]
        %v2636 = vld [vmem:[%s1 + $0xc] sm:$0xf]
        %v2637 = vld [vmem:[%s1 + $0x10] sm:$0xf]
        %v2638 = vld [vmem:[%s1 + $0x14] sm:$0xf]
        %v2639 = vld [vmem:[%s1 + $0x18] sm:$0xf]
        %v2640 = vld [vmem:[%s1 + $0x1c] sm:$0xf]
        %v2641 = vld [vmem:[%s1 + $0x20] sm:$0xf]
        %v2642 = vld [vmem:[%s1 + $0x24] sm:$0xf]
        %v2643 = vld [vmem:[%s1 + $0x28] sm:$0xf]
        %v2644 = vld [vmem:[%s1 + $0x2c] sm:$0xf]
        %v2645 = vld [vmem:[%s1 + $0x30] sm:$0xf]
        %v2646 = vld [vmem:[%s1 + $0x34] sm:$0xf]
        %v2647 = vld [vmem:[%s1 + $0x38] sm:$0xf]
        %v2648 = vld [vmem:[%s1 + $0x3c] sm:$0xf]
        %v2649 = vld [vmem:[%s1 + $0x40] sm:$0xf]
        %v2650 = vld [vmem:[%s1 + $0x44] sm:$0xf]
        %v2651 = vld [vmem:[%s2] sm:$0x1]
        %v2653 = vlaneseq
        %v2654 = vshrl.u32 %v2653, 7
        %v2655 = vsub.s32 0, %v2654
        %v2656 = vrot.slane %v2651, %v2655
        %v2676 = vunpack.c.l.b16 %v2633
        %v2677 = vunpack.c.l.b16 %v2634
        %v2678 = vunpack.c.l.b16 %v2635
        %v2679 = vunpack.c.l.b16 %v2636
        %v2680 = vunpack.c.l.b16 %v2637
        %v2681 = vunpack.c.l.b16 %v2638
        %v2682 = vunpack.c.l.b16 %v2639
        %v2683 = vunpack.c.l.b16 %v2640
        %v2684 = vunpack.c.l.b16 %v2641
        %v2685 = vunpack.c.l.b16 %v2642
        %v2686 = vunpack.c.l.b16 %v2643
        %v2687 = vunpack.c.l.b16 %v2644
        %v2688 = vunpack.c.l.b16 %v2645
        %v2689 = vunpack.c.l.b16 %v2646
        %v2690 = vunpack.c.l.b16 %v2647
        %v2691 = vunpack.c.l.b16 %v2648
        %v2692 = vunpack.c.l.b16 %v2649
        %v2693 = vunpack.c.l.b16 %v2650
        %v2694 = vpack.c.b16 %v2677, %v2676
        %v2695 = vpack.c.b16 %v2679, %v2678
        %v2696 = vpack.c.b16 %v2681, %v2680
        %v2697 = vpack.c.b16 %v2683, %v2682
        %v2698 = vpack.c.b16 %v2685, %v2684
        %v2699 = vpack.c.b16 %v2687, %v2686
        %v2700 = vpack.c.b16 %v2689, %v2688
        %v2701 = vpack.c.b16 %v2691, %v2690
        %v2702 = vpack.c.b16 %v2693, %v2692
        %v2713 = vsel %vm2386, %v2340, 0
        %v2716 = vsel %vm2386, %v2343, 0
        %v2719 = vsel %vm2386, %v2346, 0
        %v2722 = vsel %vm2386, %v2349, 0
        %v2725 = vsel %vm2386, %v2352, 0
        %v2728 = vsel %vm2386, %v2355, 0
        %v2731 = vsel %vm2386, %v2358, 0
        %v2734 = vsel %vm2386, %v2361, 0
        %v2737 = vsel %vm2386, %v2364, 0
        %v2740 = vsel %vm2386, %v2367, 0
        %v2743 = vsel %vm2386, %v2370, 0
        %v2746 = vsel %vm2386, %v2373, 0
        %v2749 = vsel %vm2386, %v2376, 0
        %v2752 = vsel %vm2386, %v2379, 0
        %v2755 = vsel %vm2386, %v2382, 0
        %v2758 = vsel %vm2386, %v2385, 0
        %2760 = vmatprep.subr.bf16.mxu0 0
        %2761 = vmatpush1.bf16.msra.mxu0 %v2701
        %2762 = vmatprep.subr.bf16.mxu0 0
        %2763 = vmatpush1.bf16.msra.mxu0 %v2700
        %2764 = vmatprep.subr.bf16.mxu0 0
        %2765 = vmatpush1.bf16.msra.mxu0 %v2699
        %2766 = vmatprep.subr.bf16.mxu0 0
        %2767 = vmatpush1.bf16.msra.mxu0 %v2698
        %2768 = vmatprep.subr.bf16.mxu0 0
        %2769 = vmatpush1.bf16.msra.mxu0 %v2697
        %2770 = vmatprep.subr.bf16.mxu0 0
        %2771 = vmatpush1.bf16.msra.mxu0 %v2696
        %2772 = vmatprep.subr.bf16.mxu0 0
        %2773 = vmatpush1.bf16.msra.mxu0 %v2695
        %2774 = vmatprep.subr.bf16.mxu0 0
        %2775 = vmatpush1.bf16.msra.mxu0 %v2694
        %2776 = vmatprep.subr.bf16.mxu0 0
        %2777 = vmatpush2.bf16.msra.mxu0 0
        %2778 = vmatprep.subr.bf16.mxu0 0
        %2779 = vmatpush2.bf16.msra.mxu0 0
        %2780 = vmatprep.subr.bf16.mxu0 0
        %2781 = vmatpush2.bf16.msra.mxu0 0
        %2782 = vmatprep.subr.bf16.mxu0 0
        %2783 = vmatpush2.bf16.msra.mxu0 0
        %2784 = vmatprep.subr.bf16.mxu0 0
        %2785 = vmatpush2.bf16.msra.mxu0 0
        %2786 = vmatprep.subr.bf16.mxu0 0
        %2787 = vmatpush2.bf16.msra.mxu0 0
        %2788 = vmatprep.subr.bf16.mxu0 0
        %2789 = vmatpush2.bf16.msra.mxu0 0
        %2790 = vmatprep.subr.bf16.mxu0 0
        %2791 = vmatpush2.bf16.msra.mxu0 %v2702
        %2792 = vmatprep.mubr.bf16.mxu0 %v2713
        %2793 = vmatmul.mubr.bf16.gmra.mxu0 %v2586
        %v2794 = vpop.f32.mrf.mxu0
        %v2795 = vadd.f32 %v2656, %v2794
        %v2796 = vpop.f32.mrf.mxu0
        %v2797 = vpop.f32.mrf.mxu0
        %v2798 = vadd.f32 %v2656, %v2797
        %v2799 = vpop.f32.mrf.mxu0
        %2800 = vmatprep.mubr.bf16.mxu0 %v2716
        %2801 = vmatmul.mubr.bf16.gmra.mxu0 %v2589
        %v2802 = vpop.f32.mrf.mxu0
        %v2803 = vadd.f32 %v2656, %v2802
        %v2804 = vpop.f32.mrf.mxu0
        %v2805 = vpop.f32.mrf.mxu0
        %v2806 = vadd.f32 %v2656, %v2805
        %v2807 = vpop.f32.mrf.mxu0
        %2808 = vmatprep.mubr.bf16.mxu0 %v2719
        %2809 = vmatmul.mubr.bf16.gmra.mxu0 %v2592
        %v2810 = vpop.f32.mrf.mxu0
        %v2811 = vadd.f32 %v2656, %v2810
        %v2812 = vpop.f32.mrf.mxu0
        %v2813 = vpop.f32.mrf.mxu0
        %v2814 = vadd.f32 %v2656, %v2813
        %v2815 = vpop.f32.mrf.mxu0
        %2816 = vmatprep.mubr.bf16.mxu0 %v2722
        %2817 = vmatmul.mubr.bf16.gmra.mxu0 %v2595
        %v2818 = vpop.f32.mrf.mxu0
        %v2819 = vadd.f32 %v2656, %v2818
        %v2820 = vpop.f32.mrf.mxu0
        %v2821 = vpop.f32.mrf.mxu0
        %v2822 = vadd.f32 %v2656, %v2821
        %v2823 = vpop.f32.mrf.mxu0
        %2824 = vmatprep.mubr.bf16.mxu0 %v2725
        %2825 = vmatmul.mubr.bf16.gmra.mxu0 %v2598
        %v2826 = vpop.f32.mrf.mxu0
        %v2827 = vadd.f32 %v2656, %v2826
        %v2828 = vpop.f32.mrf.mxu0
        %v2829 = vpop.f32.mrf.mxu0
        %v2830 = vadd.f32 %v2656, %v2829
        %v2831 = vpop.f32.mrf.mxu0
        %2832 = vmatprep.mubr.bf16.mxu0 %v2728
        %2833 = vmatmul.mubr.bf16.gmra.mxu0 %v2601
        %v2834 = vpop.f32.mrf.mxu0
        %v2835 = vadd.f32 %v2656, %v2834
        %v2836 = vpop.f32.mrf.mxu0
        %v2837 = vpop.f32.mrf.mxu0
        %v2838 = vadd.f32 %v2656, %v2837
        %v2839 = vpop.f32.mrf.mxu0
        %2840 = vmatprep.mubr.bf16.mxu0 %v2731
        %2841 = vmatmul.mubr.bf16.gmra.mxu0 %v2604
        %v2842 = vpop.f32.mrf.mxu0
        %v2843 = vadd.f32 %v2656, %v2842
        %v2844 = vpop.f32.mrf.mxu0
        %v2845 = vpop.f32.mrf.mxu0
        %v2846 = vadd.f32 %v2656, %v2845
        %v2847 = vpop.f32.mrf.mxu0
        %2848 = vmatprep.mubr.bf16.mxu0 %v2734
        %2849 = vmatmul.mubr.bf16.gmra.mxu0 %v2607
        %v2850 = vpop.f32.mrf.mxu0
        %v2851 = vadd.f32 %v2656, %v2850
        %v2852 = vpop.f32.mrf.mxu0
        %v2853 = vpop.f32.mrf.mxu0
        %v2854 = vadd.f32 %v2656, %v2853
        %v2855 = vpop.f32.mrf.mxu0
        %2856 = vmatprep.mubr.bf16.mxu0 %v2737
        %2857 = vmatmul.mubr.bf16.gmra.mxu0 %v2610
        %v2858 = vpop.f32.mrf.mxu0
        %v2859 = vadd.f32 %v2656, %v2858
        %v2860 = vpop.f32.mrf.mxu0
        %v2861 = vpop.f32.mrf.mxu0
        %v2862 = vadd.f32 %v2656, %v2861
        %v2863 = vpop.f32.mrf.mxu0
        %2864 = vmatprep.mubr.bf16.mxu0 %v2740
        %2865 = vmatmul.mubr.bf16.gmra.mxu0 %v2613
        %v2866 = vpop.f32.mrf.mxu0
        %v2867 = vadd.f32 %v2656, %v2866
        %v2868 = vpop.f32.mrf.mxu0
        %v2869 = vpop.f32.mrf.mxu0
        %v2870 = vadd.f32 %v2656, %v2869
        %v2871 = vpop.f32.mrf.mxu0
        %2872 = vmatprep.mubr.bf16.mxu0 %v2743
        %2873 = vmatmul.mubr.bf16.gmra.mxu0 %v2616
        %v2874 = vpop.f32.mrf.mxu0
        %v2875 = vadd.f32 %v2656, %v2874
        %v2876 = vpop.f32.mrf.mxu0
        %v2877 = vpop.f32.mrf.mxu0
        %v2878 = vadd.f32 %v2656, %v2877
        %v2879 = vpop.f32.mrf.mxu0
        %2880 = vmatprep.mubr.bf16.mxu0 %v2746
        %2881 = vmatmul.mubr.bf16.gmra.mxu0 %v2619
        %v2882 = vpop.f32.mrf.mxu0
        %v2883 = vadd.f32 %v2656, %v2882
        %v2884 = vpop.f32.mrf.mxu0
        %v2885 = vpop.f32.mrf.mxu0
        %v2886 = vadd.f32 %v2656, %v2885
        %v2887 = vpop.f32.mrf.mxu0
        %2888 = vmatprep.mubr.bf16.mxu0 %v2749
        %2889 = vmatmul.mubr.bf16.gmra.mxu0 %v2622
        %v2890 = vpop.f32.mrf.mxu0
        %v2891 = vadd.f32 %v2656, %v2890
        %v2892 = vpop.f32.mrf.mxu0
        %v2893 = vpop.f32.mrf.mxu0
        %v2894 = vadd.f32 %v2656, %v2893
        %v2895 = vpop.f32.mrf.mxu0
        %2896 = vmatprep.mubr.bf16.mxu0 %v2752
        %2897 = vmatmul.mubr.bf16.gmra.mxu0 %v2625
        %v2898 = vpop.f32.mrf.mxu0
        %v2899 = vadd.f32 %v2656, %v2898
        %v2900 = vpop.f32.mrf.mxu0
        %v2901 = vpop.f32.mrf.mxu0
        %v2902 = vadd.f32 %v2656, %v2901
        %v2903 = vpop.f32.mrf.mxu0
        %2904 = vmatprep.mubr.bf16.mxu0 %v2755
        %2905 = vmatmul.mubr.bf16.gmra.mxu0 %v2628
        %v2906 = vpop.f32.mrf.mxu0
        %v2907 = vadd.f32 %v2656, %v2906
        %v2908 = vpop.f32.mrf.mxu0
        %v2909 = vpop.f32.mrf.mxu0
        %v2910 = vadd.f32 %v2656, %v2909
        %v2911 = vpop.f32.mrf.mxu0
        %2912 = vmatprep.mubr.bf16.mxu0 %v2758
        %2913 = vmatmul.mubr.bf16.gmra.mxu0 %v2631
        %v2914 = vpop.f32.mrf.mxu0
        %v2915 = vadd.f32 %v2656, %v2914
        %v2916 = vpop.f32.mrf.mxu0
        %v2917 = vpop.f32.mrf.mxu0
        %v2918 = vadd.f32 %v2656, %v2917
        %v2919 = vpop.f32.mrf.mxu0
        %2920 = vdwg.mxu0
        %v2921 = vpack.c.bf16 %v2798, %v2795
        %v2922 = vpack.c.bf16 %v2806, %v2803
        %v2923 = vpack.c.bf16 %v2814, %v2811
        %v2924 = vpack.c.bf16 %v2822, %v2819
        %v2925 = vpack.c.bf16 %v2830, %v2827
        %v2926 = vpack.c.bf16 %v2838, %v2835
        %v2927 = vpack.c.bf16 %v2846, %v2843
        %v2928 = vpack.c.bf16 %v2854, %v2851
        %v2929 = vpack.c.bf16 %v2862, %v2859
        %v2930 = vpack.c.bf16 %v2870, %v2867
        %v2931 = vpack.c.bf16 %v2878, %v2875
        %v2932 = vpack.c.bf16 %v2886, %v2883
        %v2933 = vpack.c.bf16 %v2894, %v2891
        %v2934 = vpack.c.bf16 %v2902, %v2899
        %v2935 = vpack.c.bf16 %v2910, %v2907
        %v2936 = vpack.c.bf16 %v2918, %v2915
        %v2953 = vunpack.c.l.b16 %v2921
        %v2954 = vunpack.c.h.b16 %v2921
        %v2955 = vunpack.c.l.b16 %v2922
        %v2956 = vunpack.c.h.b16 %v2922
        %v2957 = vunpack.c.l.b16 %v2923
        %v2958 = vunpack.c.h.b16 %v2923
        %v2959 = vunpack.c.l.b16 %v2924
        %v2960 = vunpack.c.h.b16 %v2924
        %v2961 = vunpack.c.l.b16 %v2925
        %v2962 = vunpack.c.h.b16 %v2925
        %v2963 = vunpack.c.l.b16 %v2926
        %v2964 = vunpack.c.h.b16 %v2926
        %v2965 = vunpack.c.l.b16 %v2927
        %v2966 = vunpack.c.h.b16 %v2927
        %v2967 = vunpack.c.l.b16 %v2928
        %v2968 = vunpack.c.h.b16 %v2928
        %v2969 = vunpack.c.l.b16 %v2929
        %v2970 = vunpack.c.h.b16 %v2929
        %v2971 = vunpack.c.l.b16 %v2930
        %v2972 = vunpack.c.h.b16 %v2930
        %v2973 = vunpack.c.l.b16 %v2931
        %v2974 = vunpack.c.h.b16 %v2931
        %v2975 = vunpack.c.l.b16 %v2932
        %v2976 = vunpack.c.h.b16 %v2932
        %v2977 = vunpack.c.l.b16 %v2933
        %v2978 = vunpack.c.h.b16 %v2933
        %v2979 = vunpack.c.l.b16 %v2934
        %v2980 = vunpack.c.h.b16 %v2934
        %v2981 = vunpack.c.l.b16 %v2935
        %v2982 = vunpack.c.h.b16 %v2935
        %v2983 = vunpack.c.l.b16 %v2936
        %v2984 = vunpack.c.h.b16 %v2936
        %v2985 = vpack.c.b16 %v2953, %v2953
        %v2986 = vpack.c.b16 %v2954, %v2954
        %v2987 = vpack.c.b16 %v2955, %v2955
        %v2988 = vpack.c.b16 %v2956, %v2956
        %v2989 = vpack.c.b16 %v2957, %v2957
        %v2990 = vpack.c.b16 %v2958, %v2958
        %v2991 = vpack.c.b16 %v2959, %v2959
        %v2992 = vpack.c.b16 %v2960, %v2960
        %v2993 = vpack.c.b16 %v2961, %v2961
        %v2994 = vpack.c.b16 %v2962, %v2962
        %v2995 = vpack.c.b16 %v2963, %v2963
        %v2996 = vpack.c.b16 %v2964, %v2964
        %v2997 = vpack.c.b16 %v2965, %v2965
        %v2998 = vpack.c.b16 %v2966, %v2966
        %v2999 = vpack.c.b16 %v2967, %v2967
        %v3000 = vpack.c.b16 %v2968, %v2968
        %v3001 = vpack.c.b16 %v2969, %v2969
        %v3002 = vpack.c.b16 %v2970, %v2970
        %v3003 = vpack.c.b16 %v2971, %v2971
        %v3004 = vpack.c.b16 %v2972, %v2972
        %v3005 = vpack.c.b16 %v2973, %v2973
        %v3006 = vpack.c.b16 %v2974, %v2974
        %v3007 = vpack.c.b16 %v2975, %v2975
        %v3008 = vpack.c.b16 %v2976, %v2976
        %v3009 = vpack.c.b16 %v2977, %v2977
        %v3010 = vpack.c.b16 %v2978, %v2978
        %v3011 = vpack.c.b16 %v2979, %v2979
        %v3012 = vpack.c.b16 %v2980, %v2980
        %v3013 = vpack.c.b16 %v2981, %v2981
        %v3014 = vpack.c.b16 %v2982, %v2982
        %v3015 = vpack.c.b16 %v2983, %v2983
        %v3016 = vpack.c.b16 %v2984, %v2984
        %vm3049 = vcmask 257024
        %3050 = vst.msk [vmem:[%s188] sm:$0xf] %vm3049, %v2985
        %3051 = vst.msk [vmem:[%s188 + $0x4] sm:$0xf] %vm3049, %v2986
        %3052 = vst.msk [vmem:[%s188 + $0x8] sm:$0xf] %vm3049, %v2987
        %3053 = vst.msk [vmem:[%s188 + $0xc] sm:$0xf] %vm3049, %v2988
        %3054 = vst.msk [vmem:[%s188 + $0x10] sm:$0xf] %vm3049, %v2989
        %3055 = vst.msk [vmem:[%s188 + $0x14] sm:$0xf] %vm3049, %v2990
        %3056 = vst.msk [vmem:[%s188 + $0x18] sm:$0xf] %vm3049, %v2991
        %3057 = vst.msk [vmem:[%s188 + $0x1c] sm:$0xf] %vm3049, %v2992
        %3058 = vst.msk [vmem:[%s188 + $0x20] sm:$0xf] %vm3049, %v2993
        %3059 = vst.msk [vmem:[%s188 + $0x24] sm:$0xf] %vm3049, %v2994
        %3060 = vst.msk [vmem:[%s188 + $0x28] sm:$0xf] %vm3049, %v2995
        %3061 = vst.msk [vmem:[%s188 + $0x2c] sm:$0xf] %vm3049, %v2996
        %3062 = vst.msk [vmem:[%s188 + $0x30] sm:$0xf] %vm3049, %v2997
        %3063 = vst.msk [vmem:[%s188 + $0x34] sm:$0xf] %vm3049, %v2998
        %3064 = vst.msk [vmem:[%s188 + $0x38] sm:$0xf] %vm3049, %v2999
        %3065 = vst.msk [vmem:[%s188 + $0x3c] sm:$0xf] %vm3049, %v3000
        %3066 = vst.msk [vmem:[%s188 + $0x40] sm:$0xf] %vm3049, %v3001
        %3067 = vst.msk [vmem:[%s188 + $0x44] sm:$0xf] %vm3049, %v3002
        %3068 = vst.msk [vmem:[%s188 + $0x48] sm:$0xf] %vm3049, %v3003
        %3069 = vst.msk [vmem:[%s188 + $0x4c] sm:$0xf] %vm3049, %v3004
        %3070 = vst.msk [vmem:[%s188 + $0x50] sm:$0xf] %vm3049, %v3005
        %3071 = vst.msk [vmem:[%s188 + $0x54] sm:$0xf] %vm3049, %v3006
        %3072 = vst.msk [vmem:[%s188 + $0x58] sm:$0xf] %vm3049, %v3007
        %3073 = vst.msk [vmem:[%s188 + $0x5c] sm:$0xf] %vm3049, %v3008
        %3074 = vst.msk [vmem:[%s188 + $0x60] sm:$0xf] %vm3049, %v3009
        %3075 = vst.msk [vmem:[%s188 + $0x64] sm:$0xf] %vm3049, %v3010
        %3076 = vst.msk [vmem:[%s188 + $0x68] sm:$0xf] %vm3049, %v3011
        %3077 = vst.msk [vmem:[%s188 + $0x6c] sm:$0xf] %vm3049, %v3012
        %3078 = vst.msk [vmem:[%s188 + $0x70] sm:$0xf] %vm3049, %v3013
        %3079 = vst.msk [vmem:[%s188 + $0x74] sm:$0xf] %vm3049, %v3014
        %3080 = vst.msk [vmem:[%s188 + $0x78] sm:$0xf] %vm3049, %v3015
        %3081 = vst.msk [vmem:[%s188 + $0x7c] sm:$0xf] %vm3049, %v3016
        %s3082 = sand.u32 %s96, 1
        %s3083 = scalar_lea.sflag [#allocation5], %s3082
        %s3084 = sand.u32 %s96, 1
        %s3085 = smul.addr %s3084, 128
        %s3086 = scalar_lea.vmem [#allocation6], %s3085
        // Predicated region
        $region37: #{tpu_custom_call.1} parent=31 // pred_check
          %p3087 = pneg %p106
        $region38: #{tpu_custom_call.1} parent=31 // pred_check_branch
          %3089 = sbr.rel (%p3087) target = $region40
        $region39: #{tpu_custom_call.1} parent=31 // pred_region
          %s3091 = ssub.s32 2048, 2048
          %3092 = vsyncadd %s3083, %s3091
          %s3093 = smul.addr %s20, 32
          %s3094 = smul.addr %s3093, 64
          %s3095 = scalar_lea.hbm %s3, %s3094
          %s3096 = sshll.u32 %s3086, 4
          %s3097 = int_to_ptr.vmem [resolvable:$true] %s3096
          %3102 = dma.vmem_to_hbm [thread:$0]  %s3097, 2048, %s3095, %s3083, 64, 64, 4
        $region40: #{tpu_custom_call.1} parent=31 // pred_fallthru
          _
      $region32: #{tpu_custom_call.1} parent=5 // pred_fallthru
        _
      %p3103 = scmp.le.s32.totalorder 2, %s15
      // Predicated region
      $region41: #{tpu_custom_call.1} parent=5 // pred_check
        %p3104 = pneg %p3103
      $region42: #{tpu_custom_call.1} parent=5 // pred_check_branch
        %3106 = sbr.rel (%p3104) target = $region44
      $region43: #{tpu_custom_call.1} parent=5 // pred_region
        %s3107 = ssub.s32 %s15, 2
        // Predicated region
        $region45: #{tpu_custom_call.1} parent=43 // pred_check
          %p3108 = pneg %p112
        $region46: #{tpu_custom_call.1} parent=43 // pred_check_branch
          %3110 = sbr.rel (%p3108) target = $region48
        $region47: #{tpu_custom_call.1} parent=43 // pred_region
          %s3111 = sand.u32 %s97, 1
          %s3112 = scalar_lea.sflag [#allocation5], %s3111
          %s3113 = sand.u32 %s97, 1
          %s3114 = smul.addr %s3113, 128
          %s3115 = scalar_lea.vmem [#allocation6], %s3114
          %3116 = dma.done %s3112, 2048
        $region48: #{tpu_custom_call.1} parent=43 // pred_fallthru
          _
      $region44: #{tpu_custom_call.1} parent=5 // pred_fallthru
        _
    $region6: #{tpu_custom_call.1} parent=1 // loop_footer
      %s19 = sadd.s32 1, %s15
    $region7: #{tpu_custom_call.1} parent=1 // loop_footer_branch
      %14 = sbr.rel target = $region3
    $region8: #{tpu_custom_call.1} parent=1 // loop_exit
      _
    %3117 = vsyncpa [#allocation4], 1
    %s3118 = scalar_lea.sflag [#allocation4], 1
    %3119 = vsyncpa %s3118, 1
    %3120 = vsyncpa [#allocation5], 1
    %s3121 = scalar_lea.sflag [#allocation5], 1
    %3122 = vsyncpa %s3121, 1

</llo_original>
